<compile_context>
chip_gen: v6e
topology: v6e:2x2x1
jax: 0.10.0
libtpu: 0.0.40
codegen_flags: <defaults>
</compile_context>

<pallas_src>
import functools
import math

import jax
import jax.numpy as jnp
from jax import lax
from jax.experimental import pallas as pl
from jax.experimental.pallas import tpu as pltpu


_VMEM = pl.BlockSpec(memory_space=pltpu.MemorySpace.VMEM)


def _pt_padding(size_out, size_in, kernel_size, stride, dilation):
    """Port of the module-level `padding` helper. Returns (pad_h, pad_w)."""
    t1 = (size_out - 1) * stride
    t2 = (kernel_size - 1) * dilation
    pad = t1 - size_in + t2 + 1
    left = pad // 2
    right = pad - left
    return (left, right)


# --------------------------------------------------------------------------
# pltpu.roll direction probe (one-time, eager).  pltpu.roll is documented to
# follow jnp.roll semantics; the probe pins the rotation direction down on
# the actual hardware, and the known-answer check in __main__ makes any
# residual mismatch a hard failure instead of a silent one.
# --------------------------------------------------------------------------
def _roll_probe_kernel(x_ref, o_ref):
    o_ref[...] = pltpu.roll(x_ref[...], 1, axis=1)


@functools.lru_cache(maxsize=None)
def _probe_roll_sign():
    x = jnp.tile(jnp.arange(128, dtype=jnp.float32)[None, :], (8, 1))
    y = pl.pallas_call(
        _roll_probe_kernel,
        out_shape=jax.ShapeDtypeStruct((8, 128), jnp.float32),
        in_specs=[_VMEM],
        out_specs=_VMEM,
    )(x)
    # jnp.roll convention: roll(x, 1)[:, 1] == x[:, 0].  Gathering
    # out[s] = x[s + k] then needs shift = -k (sign = -1).
    return -1 if bool(y[0, 1] == x[0, 0]) else 1


def _roll_gather_sign():
    """Sign s such that pltpu.roll(x, (s*k) % n, axis) gives
    out[..., i] = x[..., i + k] (wrap-around is masked off by the caller)."""
    try:
        return _probe_roll_sign()
    except Exception:
        # Probing needs eager execution; under a trace fall back to the
        # documented jnp.roll-compatible convention.  The reference check in
        # __main__ would catch a flip.
        return -1


# --------------------------------------------------------------------------
# Constant helpers (wrapper side; constant-folded under jit).
# --------------------------------------------------------------------------
def _make_pool_matrix(B, H, W):
    """(B*H*W, B*(H//2)*(W//2)) matrix so that x @ P == F.avg_pool2d(x, 2) in
    the channels-major (C, B*H*W) layout.  Entries are 0 / 0.25 (bf16-exact)."""
    Ho, Wo = H // 2, W // 2
    s = jnp.arange(B * H * W)
    b = s // (H * W)
    h = (s % (H * W)) // W
    w = s % W
    t = b * (Ho * Wo) + (h // 2) * Wo + (w // 2)
    tgt = jnp.arange(B * Ho * Wo)
    return (t[:, None] == tgt[None, :]).astype(jnp.float32) * 0.25


class _SlabPacker:
    """Row-stacks many small 2-D constants into one slab (one DMA); pieces are
    addressed in-kernel with static (row_offset, rows, cols) offsets."""

    def __init__(self, dtype):
        self.dtype = dtype
        itemsize = jnp.dtype(dtype).itemsize
        self._rowpad = max(8, (8 * 4) // itemsize)   # sublane-tile aligned
        self.pieces = []
        self.offsets = {}
        self._row = 0

    def add(self, name, arr):
        arr = jnp.asarray(arr, self.dtype)
        assert arr.ndim == 2
        r, c = int(arr.shape[0]), int(arr.shape[1])
        self.offsets[name] = (self._row, r, c)
        self.pieces.append(arr)
        self._row += -(-r // self._rowpad) * self._rowpad

    def build(self):
        if not self.pieces:
            return None
        cols = max(int(a.shape[1]) for a in self.pieces)
        padded = []
        for a in self.pieces:
            r, c = int(a.shape[0]), int(a.shape[1])
            rp = -(-r // self._rowpad) * self._rowpad
            padded.append(jnp.pad(a, ((0, rp - r), (0, cols - c))))
        return jnp.concatenate(padded, axis=0)


# --------------------------------------------------------------------------
# Fused whole-forward kernel.
# --------------------------------------------------------------------------
def _make_fused_kernel(cfg):
    B = cfg["batch"]
    alpha = cfg["lrelu_alpha"]
    eps = cfg["bn_eps"]
    fading = cfg["fading"]
    fade_alpha = cfg["fade_alpha"]
    stages = cfg["stages"]
    c_fin = cfg["c_final"]
    Kf = cfg["final_k"]
    roll_sign = cfg["roll_sign"]
    c_off = cfg["const_off"]
    i_off = cfg["idx_off"]
    p_off = cfg["pool_off"]
    has_pool = cfg["has_pool"]
    f32 = jnp.float32

    def kernel(*refs):
        if has_pool:
            x_in_ref, const_ref, idx_ref, pool_ref, out_ref = refs
        else:
            x_in_ref, const_ref, idx_ref, out_ref = refs
            pool_ref = None

        def cslice(name):
            ro, r, c = c_off[name]
            return const_ref[ro:ro + r, 0:c]

        x_img = x_in_ref[...]                                    # (Cimg, S0)

        # from_rgb: 1x1 conv == per-pixel channel matmul on the MXU.
        x = jnp.dot(cslice("rgb_w"), x_img,
                    preferred_element_type=f32) + cslice("rgb_b")

        for si, st in enumerate(stages):
            R = st["R"]
            S = B * R * R
            ro_idx = i_off[R][0]
            h_idx = idx_ref[ro_idx:ro_idx + 1, 0:S]              # (1, S) f32
            w_idx = idx_ref[ro_idx + 1:ro_idx + 2, 0:S]
            mask_cache = {}

            def tap_mask(dh, dw):
                key = (dh, dw)
                if key not in mask_cache:
                    conds = []
                    if dh < 0:
                        conds.append(h_idx >= float(-dh))
                    if dh > 0:
                        conds.append(h_idx < float(R - dh))
                    if dw < 0:
                        conds.append(w_idx >= float(-dw))
                    if dw > 0:
                        conds.append(w_idx < float(R - dw))
                    if conds:
                        m = conds[0]
                        for c in conds[1:]:
                            m = m & c
                        mask_cache[key] = m.astype(f32)
                    else:
                        mask_cache[key] = None
                return mask_cache[key]

            for (li, cin, cout, k) in st["layers"]:
                r = k // 2
                # In-kernel im2col: k*k masked lane rotations (XLU) stacked on
                # the sublane axis, then a single MXU matmul (K = k*k*cin).
                taps = []
                for kh in range(k):
                    for kw in range(k):
                        dh, dw = kh - r, kw - r
                        off = dh * R + dw          # flat (b,h,w) lane offset
                        if off == 0:
                            xs = x
                        else:
                            xs = pltpu.roll(x, (roll_sign * off) % S, axis=1)
                        m = tap_mask(dh, dw)
                        if m is not None:
                            xs = xs * m            # zero padding at borders
                        taps.append(xs)
                slab = jnp.concatenate(taps, axis=0)        # (k*k*cin, S)
                vec = cslice(("vec", li))                   # (cout, 3)
                y = jnp.dot(cslice(("w", li)), slab,
                            preferred_element_type=f32) + vec[:, 0:1]
                # BatchNorm2d (training mode): one-pass batch statistics over
                # the lane axis (batch*H*W); biased variance.
                inv_n = 1.0 / float(S)
                s1 = jnp.sum(y, axis=1, keepdims=True)
                s2 = jnp.sum(y * y, axis=1, keepdims=True)
                mean = s1 * inv_n
                var = jnp.maximum(s2 * inv_n - mean * mean, 0.0)
                yn = (y - mean) * (lax.rsqrt(var + eps) * vec[:, 1:2]) \
                    + vec[:, 2:3]                           # gamma, beta
                x = jnp.where(yn >= 0.0, yn, alpha * yn)    # LeakyReLU

            if st["pool_after"]:
                ro_p, rows_p, cols_p = p_off[si]
                # F.avg_pool2d(kernel_size=2) as a single MXU matmul; the
                # 0/0.25 matrix is stored bf16 in HBM and upcast (exact).
                P = pool_ref[ro_p:ro_p + rows_p, 0:cols_p].astype(f32)
                x = jnp.dot(x, P, preferred_element_type=f32)
                if fading and si == 0:
                    # prev_x = prev_from_rgb(avg_pool2d(img, 2)) * (1 - a)
                    img_pooled = jnp.dot(x_img, P, preferred_element_type=f32)
                    prev = (jnp.dot(cslice("prev_w"), img_pooled,
                                    preferred_element_type=f32)
                            + cslice("prev_b")) * (1.0 - fade_alpha)
                    x = prev + fade_alpha * x

        # final_conv (kernel == last resolution, valid conv -> 1x1 output),
        # final LeakyReLU and the fc head, fused.  Per-batch static lane
        # slices of the live value -- no VMEM scratch round-trip.
        KK = Kf * Kf
        wf_ro = c_off["wfin"][0]
        cols = []
        for b in range(B):
            xb = x[:, b * KK:(b + 1) * KK]                    # (c_fin, KK)
            acc = None
            for ci in range(c_fin):
                wblk = const_ref[wf_ro + ci * c_fin:
                                 wf_ro + (ci + 1) * c_fin, 0:KK]
                part = wblk * xb[ci:ci + 1, :]
                acc = part if acc is None else acc + part
            cols.append(jnp.sum(acc, axis=1, keepdims=True))  # (c_fin, 1)
        h = jnp.concatenate(cols, axis=1) + cslice("bfin")    # (c_fin, B)
        h = jnp.where(h >= 0.0, h, alpha * h)                 # final_activation
        out = jnp.sum(cslice("fcw") * h, axis=0, keepdims=True) + cslice("fcb")
        out_ref[...] = out                                    # (1, B)

    return kernel


# --------------------------------------------------------------------------
# Forward wrapper: packs torch-style parameters into a few MXU/lane-friendly
# slabs and launches the single fused kernel.
# --------------------------------------------------------------------------
def discriminator_forward(params, x_nchw, *, fading=False, fade_alpha=0.0,
                          lrelu_alpha=0.2, bn_eps=1e-5):
    f32 = jnp.float32
    B, Cimg, H0, W0 = x_nchw.shape
    assert H0 == W0, "square inputs expected"
    blocks = params["blocks"]
    n_blocks = len(blocks)
    assert n_blocks >= 1
    if fading:
        assert n_blocks >= 2 and "prev_from_rgb" in params

    proc_blocks = list(reversed(blocks))   # newest (highest resolution) first

    # Static architecture description driving kernel code generation.
    stages = []
    R = H0
    li = 0
    for si, blk in enumerate(proc_blocks):
        layers = []
        for layer in blk:
            cout, cin, kh, kw = layer["w"].shape
            assert kh == kw, "square kernels expected"
            p = _pt_padding(R, R, kh, 1, 1)
            # TODO(synk): only the symmetric 'same' padding produced for the
            # module's realized config (odd k, stride 1) is implemented.
            assert p == (kh // 2, kh // 2), f"unsupported padding {p}"
            layers.append((li, int(cin), int(cout), int(kh)))
            li += 1
        pool_after = si < n_blocks - 1
        stages.append({"R": int(R), "layers": layers, "pool_after": pool_after})
        if pool_after:
            R //= 2

    c_final, c_final_in, Kf, Kf2 = params["final_conv"]["w"].shape
    assert c_final == c_final_in and Kf == Kf2
    assert stages[-1]["layers"][-1][2] == c_final
    assert stages[-1]["R"] == Kf, "input resolution inconsistent with growth"

    # ---- f32 constant slab (all small weights/vectors, one DMA) ----------
    const = _SlabPacker(f32)
    fr = params["from_rgb"]
    const.add("rgb_w", fr["w"].reshape(fr["w"].shape[0], Cimg))
    const.add("rgb_b", fr["b"].reshape(-1, 1))
    if fading:
        pr = params["prev_from_rgb"]
        const.add("prev_w", pr["w"].reshape(pr["w"].shape[0], Cimg))
        const.add("prev_b", pr["b"].reshape(-1, 1))
    li = 0
    for blk in proc_blocks:
        for layer in blk:
            cout, cin, k, _ = layer["w"].shape
            # (cout, (kh*k + kw)*cin + ci): one im2col-ready matrix per layer.
            wm = jnp.transpose(layer["w"], (0, 2, 3, 1)).reshape(
                cout, k * k * cin)
            const.add(("w", li), wm)
            const.add(("vec", li), jnp.stack(
                [layer["b"], layer["gamma"], layer["beta"]], axis=1))
            li += 1
    fcv = params["final_conv"]
    const.add("wfin", jnp.transpose(fcv["w"], (1, 0, 2, 3)).reshape(
        c_final * c_final, Kf * Kf))          # NOT tiled over batch
    const.add("bfin", fcv["b"].reshape(-1, 1))
    const.add("fcw", params["fc"]["w"].reshape(-1, 1))
    const.add("fcb", params["fc"]["b"].reshape(1, 1))
    const_slab = const.build()

    # ---- per-resolution (h, w) index rows for in-kernel border masks ------
    idxp = _SlabPacker(f32)
    for st in stages:
        Rr = st["R"]
        s = jnp.arange(B * Rr * Rr)
        h_row = ((s % (Rr * Rr)) // Rr).astype(f32)
        w_row = (s % Rr).astype(f32)
        idxp.add(Rr, jnp.stack([h_row, w_row], axis=0))
    idx_slab = idxp.build()

    # ---- avg-pool matrices, bf16 storage (0 / 0.25 exact) -----------------
    poolp = _SlabPacker(jnp.bfloat16)
    for si, st in enumerate(stages):
        if st["pool_after"]:
            poolp.add(si, _make_pool_matrix(B, st["R"], st["R"]))
    pool_slab = poolp.build()
    has_pool = pool_slab is not None

    cfg = dict(batch=int(B), lrelu_alpha=float(lrelu_alpha),
               bn_eps=float(bn_eps), fading=bool(fading),
               fade_alpha=float(fade_alpha), stages=stages,
               c_final=int(c_final), final_k=int(Kf),
               roll_sign=_roll_gather_sign(),
               const_off=const.offsets, idx_off=idxp.offsets,
               pool_off=poolp.offsets, has_pool=has_pool)

    # NCHW image -> (channels, batch*H*W): spatial axis is lane-dense.
    operands = [jnp.transpose(x_nchw, (1, 0, 2, 3))
                .reshape(Cimg, B * H0 * W0).astype(f32),
                const_slab, idx_slab]
    if has_pool:
        operands.append(pool_slab)

    kernel = _make_fused_kernel(cfg)
    out = pl.pallas_call(
        kernel,
        out_shape=jax.ShapeDtypeStruct((1, B), f32),
        in_specs=[_VMEM] * len(operands),
        out_specs=_VMEM,
    )(*operands)
    return out.reshape(B, 1)


# --------------------------------------------------------------------------
# Pure-JAX reference (mirrors the torch forward) for the known-answer check.
# --------------------------------------------------------------------------
def _reference_forward(params, x, *, fading=False, fade_alpha=0.0,
                       lrelu_alpha=0.2, bn_eps=1e-5):
    hi = lax.Precision.HIGHEST

    def conv(h, w, b, pad_hw):
        ph, pw = pad_hw
        out = lax.conv_general_dilated(
            h, w, window_strides=(1, 1),
            padding=((ph, ph), (pw, pw)),
            dimension_numbers=("NCHW", "OIHW", "NCHW"), precision=hi)
        return out + b[None, :, None, None]

    def leaky(h):
        return jnp.where(h >= 0, h, lrelu_alpha * h)

    def bn(h, gamma, beta):
        mean = jnp.mean(h, axis=(0, 2, 3), keepdims=True)
        var = jnp.mean(jnp.square(h - mean), axis=(0, 2, 3), keepdims=True)
        hn = (h - mean) / jnp.sqrt(var + bn_eps)
        return hn * gamma[None, :, None, None] + beta[None, :, None, None]

    def pool2(h):
        n, c, hh, ww = h.shape
        return h.reshape(n, c, hh // 2, 2, ww // 2, 2).mean(axis=(3, 5))

    if fading:
        pr = params["prev_from_rgb"]
        prev = conv(pool2(x), pr["w"], pr["b"], (0, 0)) * (1.0 - fade_alpha)
    fr = params["from_rgb"]
    h = conv(x, fr["w"], fr["b"], (0, 0))
    blocks = params["blocks"]
    n_blocks = len(blocks)
    size = x.shape[-1]
    for i, blk in enumerate(reversed(blocks)):
        for layer in blk:
            k = layer["w"].shape[-1]
            p = _pt_padding(size, size, k, 1, 1)
            h = leaky(bn(conv(h, layer["w"], layer["b"], p),
                         layer["gamma"], layer["beta"]))
        if i < n_blocks - 1:
            h = pool2(h)
            size //= 2
        if fading and i == 0:
            h = prev + fade_alpha * h
    fcv = params["final_conv"]
    h = leaky(conv(h, fcv["w"], fcv["b"], (0, 0)))
    bsz = h.shape[0]
    h = h.reshape(bsz, -1)
    fc = params["fc"]
    return h @ fc["w"].T + fc["b"]


# --------------------------------------------------------------------------
# Parameter construction mirroring __init__ + successive grow() calls.
# --------------------------------------------------------------------------
def _kaiming_normal(key, shape, fan_in, a):
    gain = math.sqrt(2.0 / (1.0 + a * a))
    std = gain / math.sqrt(fan_in)
    return (std * jax.random.normal(key, shape)).astype(jnp.float32)


def build_discriminator_params(key, init_img_size, img_channels, lrelu_alpha,
                               growth_specs):
    params = {"blocks": []}
    img_size = init_img_size
    for block_params in growth_specs:
        c1, _ = block_params[0]
        if params["blocks"]:
            params["prev_from_rgb"] = params["from_rgb"]
        key, k1, k2 = jax.random.split(key, 3)
        params["from_rgb"] = {
            "w": _kaiming_normal(k1, (c1, img_channels, 1, 1), img_channels,
                                 lrelu_alpha),
            "b": (0.1 * jax.random.normal(k2, (c1,))).astype(jnp.float32),
        }
        layers = []
        in_ch = c1
        for out_ch, ksize in block_params:
            key, k1, k2 = jax.random.split(key, 3)
            layers.append({
                "w": _kaiming_normal(k1, (out_ch, in_ch, ksize, ksize),
                                     in_ch * ksize * ksize, lrelu_alpha),
                "b": (0.1 * jax.random.normal(k2, (out_ch,))).astype(jnp.float32),
                "gamma": jnp.ones((out_ch,), jnp.float32),
                "beta": jnp.zeros((out_ch,), jnp.float32),
            })
            in_ch = out_ch
        params["blocks"].append(layers)
        if len(params["blocks"]) == 1:
            key, k1, k2, k3, k4 = jax.random.split(key, 5)
            params["final_conv"] = {
                "w": _kaiming_normal(k1, (in_ch, in_ch, img_size, img_size),
                                     in_ch * img_size * img_size, lrelu_alpha),
                "b": (0.1 * jax.random.normal(k2, (in_ch,))).astype(jnp.float32),
            }
            params["fc"] = {
                "w": _kaiming_normal(k3, (1, in_ch), in_ch, lrelu_alpha),
                "b": (0.1 * jax.random.normal(k4, (1,))).astype(jnp.float32),
            }
        img_size *= 2
    return params


# --------------------------------------------------------------------------
if __name__ == "__main__":
    init_img_size = 8
    img_channels = 3
    lrelu_alpha = 0.2
    growth = [
        [(8, 3), (8, 3)],    # block 1 (deepest), built at 8x8
        [(8, 3), (8, 3)],    # block 2 (newest), built at 16x16
    ]

    key = jax.random.PRNGKey(0)
    key, pkey, xkey = jax.random.split(key, 3)
    params = build_discriminator_params(pkey, init_img_size, img_channels,
                                        lrelu_alpha, growth)

    batch = 2
    cur_res = init_img_size * 2 ** (len(growth) - 1)     # 16
    x = jax.random.normal(xkey, (batch, img_channels, cur_res, cur_res),
                          dtype=jnp.float32)

    # Pin down pltpu.roll's rotation direction once, outside any jit trace.
    _roll_gather_sign()

    fwd = jax.jit(lambda inp: discriminator_forward(
        params, inp, lrelu_alpha=lrelu_alpha))
    out = jax.block_until_ready(fwd(x))

    assert out.shape == (batch, 1), out.shape
    assert bool(jnp.all(jnp.isfinite(out)))

    # Known-answer check vs. a pure-JAX/XLA reference (hard failure instead
    # of the previous silent roll-direction fallback).  Loose tolerance only
    # to absorb MXU-vs-HIGHEST matmul rounding; structural errors are O(1).
    ref = jax.jit(lambda inp: _reference_forward(
        params, inp, lrelu_alpha=lrelu_alpha))(x)
    err = float(jnp.max(jnp.abs(out - ref)))
    assert err < 5e-2, f"kernel/reference mismatch: max abs err {err}"

    print("KERNEL_OK")
</pallas_src>

<mosaic_0001>
module attributes {stable_mosaic.version = 11 : i64} {
  func.func @_roll_probe_kernel(%arg0: memref<8x128xf32, #tpu.memory_space<vmem>>, %arg1: memref<8x128xf32, #tpu.memory_space<vmem>>) attributes {dimension_semantics = [], scalar_prefetch = 0 : i64, scratch_operands = 0 : i64, tpu.core_type = #tpu.core_type<tc>} {
    %c0 = arith.constant 0 : index
    %c0_0 = arith.constant 0 : index
    %0 = vector.load %arg0[%c0, %c0_0] : memref<8x128xf32, #tpu.memory_space<vmem>>, vector<8x128xf32>
    %c1_i32 = arith.constant 1 : i32
    %1 = tpu.dynamic_rotate %0 by %c1_i32 dim 1 : vector<8x128xf32>, i32 -> vector<8x128xf32>
    %c0_1 = arith.constant 0 : index
    %c0_2 = arith.constant 0 : index
    %2 = vector.load %arg1[%c0_1, %c0_2] : memref<8x128xf32, #tpu.memory_space<vmem>>, vector<8x128xf32>
    tpu.vector_store %arg1[%c0_1, %c0_2], %1 {strides = array<i32>} : memref<8x128xf32, #tpu.memory_space<vmem>>, vector<8x128xf32>,
    return
  }
}

module attributes {stable_mosaic.version = 11 : i64} {
  func.func @kernel(%arg0: memref<3x512xf32, #tpu.memory_space<vmem>>, %arg1: memref<168x72xf32, #tpu.memory_space<vmem>>, %arg2: memref<16x512xf32, #tpu.memory_space<vmem>>, %arg3: memref<512x128xbf16, #tpu.memory_space<vmem>>, %arg4: memref<1x2xf32, #tpu.memory_space<vmem>>) attributes {dimension_semantics = [], scalar_prefetch = 0 : i64, scratch_operands = 0 : i64, tpu.core_type = #tpu.core_type<tc>} {
    %c0 = arith.constant 0 : index
    %c0_0 = arith.constant 0 : index
    %0 = vector.load %arg0[%c0, %c0_0] : memref<3x512xf32, #tpu.memory_space<vmem>>, vector<3x512xf32>
    %c0_1 = arith.constant 0 : index
    %c0_2 = arith.constant 0 : index
    %1 = vector.load %arg1[%c0_1, %c0_2] : memref<168x72xf32, #tpu.memory_space<vmem>>, vector<8x3xf32>
    %cst = arith.constant dense<0.000000e+00> : vector<8x512xf32>
    %2 = tpu.matmul %1, %0, %cst {dimension_numbers = #tpu.dot_dimension_numbers<[1], [0], [0], [1], [0, 0, 1, 1], [], []>} : vector<8x3xf32>, vector<3x512xf32>, vector<8x512xf32> -> vector<8x512xf32>
    %c8 = arith.constant 8 : index
    %c0_3 = arith.constant 0 : index
    %3 = vector.load %arg1[%c8, %c0_3] : memref<168x72xf32, #tpu.memory_space<vmem>>, vector<8x1xf32>
    %4 = vector.broadcast %3 : vector<8x1xf32> to vector<8x512xf32>
    %5 = arith.addf %2, %4 : vector<8x512xf32>
    %c0_4 = arith.constant 0 : index
    %c0_5 = arith.constant 0 : index
    %6 = vector.load %arg2[%c0_4, %c0_5] : memref<16x512xf32, #tpu.memory_space<vmem>>, vector<1x512xf32>
    %c1 = arith.constant 1 : index
    %c0_6 = arith.constant 0 : index
    %7 = vector.load %arg2[%c1, %c0_6] : memref<16x512xf32, #tpu.memory_space<vmem>>, vector<1x512xf32>
    %c17_i32 = arith.constant 17 : i32
    %8 = tpu.dynamic_rotate %5 by %c17_i32 dim 1 : vector<8x512xf32>, i32 -> vector<8x512xf32>
    %cst_7 = arith.constant 1.000000e+00 : f32
    %9 = vector.broadcast %cst_7 : f32 to vector<1x512xf32>
    %10 = arith.cmpf oge, %6, %9 : vector<1x512xf32>
    %cst_8 = arith.constant 1.000000e+00 : f32
    %11 = vector.broadcast %cst_8 : f32 to vector<1x512xf32>
    %12 = arith.cmpf oge, %7, %11 : vector<1x512xf32>
    %13 = arith.andi %10, %12 : vector<1x512xi1>
    %14 = arith.extui %13 : vector<1x512xi1> to vector<1x512xi32>
    %15 = arith.sitofp %14 : vector<1x512xi32> to vector<1x512xf32>
    %16 = vector.broadcast %15 : vector<1x512xf32> to vector<8x512xf32>
    %17 = arith.mulf %8, %16 : vector<8x512xf32>
    %c16_i32 = arith.constant 16 : i32
    %18 = tpu.dynamic_rotate %5 by %c16_i32 dim 1 : vector<8x512xf32>, i32 -> vector<8x512xf32>
    %cst_9 = arith.constant 1.000000e+00 : f32
    %19 = vector.broadcast %cst_9 : f32 to vector<1x512xf32>
    %20 = arith.cmpf oge, %6, %19 : vector<1x512xf32>
    %21 = arith.extui %20 : vector<1x512xi1> to vector<1x512xi32>
    %22 = arith.sitofp %21 : vector<1x512xi32> to vector<1x512xf32>
    %23 = vector.broadcast %22 : vector<1x512xf32> to vector<8x512xf32>
    %24 = arith.mulf %18, %23 : vector<8x512xf32>
    %c15_i32 = arith.constant 15 : i32
    %25 = tpu.dynamic_rotate %5 by %c15_i32 dim 1 : vector<8x512xf32>, i32 -> vector<8x512xf32>
    %cst_10 = arith.constant 1.000000e+00 : f32
    %26 = vector.broadcast %cst_10 : f32 to vector<1x512xf32>
    %27 = arith.cmpf oge, %6, %26 : vector<1x512xf32>
    %cst_11 = arith.constant 1.500000e+01 : f32
    %28 = vector.broadcast %cst_11 : f32 to vector<1x512xf32>
    %29 = arith.cmpf olt, %7, %28 : vector<1x512xf32>
    %30 = arith.andi %27, %29 : vector<1x512xi1>
    %31 = arith.extui %30 : vector<1x512xi1> to vector<1x512xi32>
    %32 = arith.sitofp %31 : vector<1x512xi32> to vector<1x512xf32>
    %33 = vector.broadcast %32 : vector<1x512xf32> to vector<8x512xf32>
    %34 = arith.mulf %25, %33 : vector<8x512xf32>
    %c1_i32 = arith.constant 1 : i32
    %35 = tpu.dynamic_rotate %5 by %c1_i32 dim 1 : vector<8x512xf32>, i32 -> vector<8x512xf32>
    %cst_12 = arith.constant 1.000000e+00 : f32
    %36 = vector.broadcast %cst_12 : f32 to vector<1x512xf32>
    %37 = arith.cmpf oge, %7, %36 : vector<1x512xf32>
    %38 = arith.extui %37 : vector<1x512xi1> to vector<1x512xi32>
    %39 = arith.sitofp %38 : vector<1x512xi32> to vector<1x512xf32>
    %40 = vector.broadcast %39 : vector<1x512xf32> to vector<8x512xf32>
    %41 = arith.mulf %35, %40 : vector<8x512xf32>
    %c511_i32 = arith.constant 511 : i32
    %42 = tpu.dynamic_rotate %5 by %c511_i32 dim 1 : vector<8x512xf32>, i32 -> vector<8x512xf32>
    %cst_13 = arith.constant 1.500000e+01 : f32
    %43 = vector.broadcast %cst_13 : f32 to vector<1x512xf32>
    %44 = arith.cmpf olt, %7, %43 : vector<1x512xf32>
    %45 = arith.extui %44 : vector<1x512xi1> to vector<1x512xi32>
    %46 = arith.sitofp %45 : vector<1x512xi32> to vector<1x512xf32>
    %47 = vector.broadcast %46 : vector<1x512xf32> to vector<8x512xf32>
    %48 = arith.mulf %42, %47 : vector<8x512xf32>
    %c497_i32 = arith.constant 497 : i32
    %49 = tpu.dynamic_rotate %5 by %c497_i32 dim 1 : vector<8x512xf32>, i32 -> vector<8x512xf32>
    %cst_14 = arith.constant 1.500000e+01 : f32
    %50 = vector.broadcast %cst_14 : f32 to vector<1x512xf32>
    %51 = arith.cmpf olt, %6, %50 : vector<1x512xf32>
    %cst_15 = arith.constant 1.000000e+00 : f32
    %52 = vector.broadcast %cst_15 : f32 to vector<1x512xf32>
    %53 = arith.cmpf oge, %7, %52 : vector<1x512xf32>
    %54 = arith.andi %51, %53 : vector<1x512xi1>
    %55 = arith.extui %54 : vector<1x512xi1> to vector<1x512xi32>
    %56 = arith.sitofp %55 : vector<1x512xi32> to vector<1x512xf32>
    %57 = vector.broadcast %56 : vector<1x512xf32> to vector<8x512xf32>
    %58 = arith.mulf %49, %57 : vector<8x512xf32>
    %c496_i32 = arith.constant 496 : i32
    %59 = tpu.dynamic_rotate %5 by %c496_i32 dim 1 : vector<8x512xf32>, i32 -> vector<8x512xf32>
    %cst_16 = arith.constant 1.500000e+01 : f32
    %60 = vector.broadcast %cst_16 : f32 to vector<1x512xf32>
    %61 = arith.cmpf olt, %6, %60 : vector<1x512xf32>
    %62 = arith.extui %61 : vector<1x512xi1> to vector<1x512xi32>
    %63 = arith.sitofp %62 : vector<1x512xi32> to vector<1x512xf32>
    %64 = vector.broadcast %63 : vector<1x512xf32> to vector<8x512xf32>
    %65 = arith.mulf %59, %64 : vector<8x512xf32>
    %c495_i32 = arith.constant 495 : i32
    %66 = tpu.dynamic_rotate %5 by %c495_i32 dim 1 : vector<8x512xf32>, i32 -> vector<8x512xf32>
    %cst_17 = arith.constant 1.500000e+01 : f32
    %67 = vector.broadcast %cst_17 : f32 to vector<1x512xf32>
    %68 = arith.cmpf olt, %6, %67 : vector<1x512xf32>
    %cst_18 = arith.constant 1.500000e+01 : f32
    %69 = vector.broadcast %cst_18 : f32 to vector<1x512xf32>
    %70 = arith.cmpf olt, %7, %69 : vector<1x512xf32>
    %71 = arith.andi %68, %70 : vector<1x512xi1>
    %72 = arith.extui %71 : vector<1x512xi1> to vector<1x512xi32>
    %73 = arith.sitofp %72 : vector<1x512xi32> to vector<1x512xf32>
    %74 = vector.broadcast %73 : vector<1x512xf32> to vector<8x512xf32>
    %75 = arith.mulf %66, %74 : vector<8x512xf32>
    %76 = tpu.concatenate %17, %24, %34, %41, %5, %48, %58, %65, %75 in 0 : vector<8x512xf32>, vector<8x512xf32>, vector<8x512xf32>, vector<8x512xf32>, vector<8x512xf32>, vector<8x512xf32>, vector<8x512xf32>, vector<8x512xf32>, vector<8x512xf32> -> vector<72x512xf32>
    %c24 = arith.constant 24 : index
    %c0_19 = arith.constant 0 : index
    %77 = vector.load %arg1[%c24, %c0_19] : memref<168x72xf32, #tpu.memory_space<vmem>>, vector<8x3xf32>
    %c16 = arith.constant 16 : index
    %c0_20 = arith.constant 0 : index
    %78 = vector.load %arg1[%c16, %c0_20] : memref<168x72xf32, #tpu.memory_space<vmem>>, vector<8x72xf32>
    %cst_21 = arith.constant dense<0.000000e+00> : vector<8x512xf32>
    %79 = tpu.matmul %78, %76, %cst_21 {dimension_numbers = #tpu.dot_dimension_numbers<[1], [0], [0], [1], [0, 0, 1, 1], [], []>} : vector<8x72xf32>, vector<72x512xf32>, vector<8x512xf32> -> vector<8x512xf32>
    %80 = vector.extract_strided_slice %77 {offsets = [0, 0], sizes = [8, 1], strides = [1, 1]} : vector<8x3xf32> to vector<8x1xf32>
    %81 = vector.broadcast %80 : vector<8x1xf32> to vector<8x512xf32>
    %82 = arith.addf %79, %81 : vector<8x512xf32>
    %cst_22 = arith.constant dense<0.000000e+00> : vector<8xf32>
    %83 = vector.multi_reduction <add>, %82, %cst_22 [1] : vector<8x512xf32> to vector<8xf32>
    %84 = vector.shape_cast %83 : vector<8xf32> to vector<8x1xf32>
    %85 = arith.mulf %82, %82 : vector<8x512xf32>
    %cst_23 = arith.constant dense<0.000000e+00> : vector<8xf32>
    %86 = vector.multi_reduction <add>, %85, %cst_23 [1] : vector<8x512xf32> to vector<8xf32>
    %87 = vector.shape_cast %86 : vector<8xf32> to vector<8x1xf32>
    %cst_24 = arith.constant 0.001953125 : f32
    %88 = vector.broadcast %cst_24 : f32 to vector<8x1xf32>
    %89 = arith.mulf %84, %88 : vector<8x1xf32>
    %cst_25 = arith.constant 0.001953125 : f32
    %90 = vector.broadcast %cst_25 : f32 to vector<8x1xf32>
    %91 = arith.mulf %87, %90 : vector<8x1xf32>
    %92 = arith.mulf %89, %89 : vector<8x1xf32>
    %93 = arith.subf %91, %92 : vector<8x1xf32>
    %cst_26 = arith.constant 0.000000e+00 : f32
    %94 = vector.broadcast %cst_26 : f32 to vector<8x1xf32>
    %95 = arith.maximumf %93, %94 : vector<8x1xf32>
    %96 = vector.broadcast %89 : vector<8x1xf32> to vector<8x512xf32>
    %97 = arith.subf %82, %96 : vector<8x512xf32>
    %cst_27 = arith.constant 9.99999974E-6 : f32
    %98 = vector.broadcast %cst_27 : f32 to vector<8x1xf32>
    %99 = arith.addf %95, %98 : vector<8x1xf32>
    %100 = math.rsqrt %99 : vector<8x1xf32>
    %101 = vector.extract_strided_slice %77 {offsets = [0, 1], sizes = [8, 1], strides = [1, 1]} : vector<8x3xf32> to vector<8x1xf32>
    %102 = arith.mulf %100, %101 : vector<8x1xf32>
    %103 = vector.broadcast %102 : vector<8x1xf32> to vector<8x512xf32>
    %104 = arith.mulf %97, %103 : vector<8x512xf32>
    %105 = vector.extract_strided_slice %77 {offsets = [0, 2], sizes = [8, 1], strides = [1, 1]} : vector<8x3xf32> to vector<8x1xf32>
    %106 = vector.broadcast %105 : vector<8x1xf32> to vector<8x512xf32>
    %107 = arith.addf %104, %106 : vector<8x512xf32>
    %cst_28 = arith.constant 0.000000e+00 : f32
    %108 = vector.broadcast %cst_28 : f32 to vector<8x512xf32>
    %109 = arith.cmpf oge, %107, %108 : vector<8x512xf32>
    %cst_29 = arith.constant 2.000000e-01 : f32
    %110 = vector.broadcast %cst_29 : f32 to vector<8x512xf32>
    %111 = arith.mulf %110, %107 : vector<8x512xf32>
    %112 = arith.select %109, %107, %111 : vector<8x512xi1>, vector<8x512xf32>
    %c17_i32_30 = arith.constant 17 : i32
    %113 = tpu.dynamic_rotate %112 by %c17_i32_30 dim 1 : vector<8x512xf32>, i32 -> vector<8x512xf32>
    %114 = vector.broadcast %15 : vector<1x512xf32> to vector<8x512xf32>
    %115 = arith.mulf %113, %114 : vector<8x512xf32>
    %c16_i32_31 = arith.constant 16 : i32
    %116 = tpu.dynamic_rotate %112 by %c16_i32_31 dim 1 : vector<8x512xf32>, i32 -> vector<8x512xf32>
    %117 = vector.broadcast %22 : vector<1x512xf32> to vector<8x512xf32>
    %118 = arith.mulf %116, %117 : vector<8x512xf32>
    %c15_i32_32 = arith.constant 15 : i32
    %119 = tpu.dynamic_rotate %112 by %c15_i32_32 dim 1 : vector<8x512xf32>, i32 -> vector<8x512xf32>
    %120 = vector.broadcast %32 : vector<1x512xf32> to vector<8x512xf32>
    %121 = arith.mulf %119, %120 : vector<8x512xf32>
    %c1_i32_33 = arith.constant 1 : i32
    %122 = tpu.dynamic_rotate %112 by %c1_i32_33 dim 1 : vector<8x512xf32>, i32 -> vector<8x512xf32>
    %123 = vector.broadcast %39 : vector<1x512xf32> to vector<8x512xf32>
    %124 = arith.mulf %122, %123 : vector<8x512xf32>
    %c511_i32_34 = arith.constant 511 : i32
    %125 = tpu.dynamic_rotate %112 by %c511_i32_34 dim 1 : vector<8x512xf32>, i32 -> vector<8x512xf32>
    %126 = vector.broadcast %46 : vector<1x512xf32> to vector<8x512xf32>
    %127 = arith.mulf %125, %126 : vector<8x512xf32>
    %c497_i32_35 = arith.constant 497 : i32
    %128 = tpu.dynamic_rotate %112 by %c497_i32_35 dim 1 : vector<8x512xf32>, i32 -> vector<8x512xf32>
    %129 = vector.broadcast %56 : vector<1x512xf32> to vector<8x512xf32>
    %130 = arith.mulf %128, %129 : vector<8x512xf32>
    %c496_i32_36 = arith.constant 496 : i32
    %131 = tpu.dynamic_rotate %112 by %c496_i32_36 dim 1 : vector<8x512xf32>, i32 -> vector<8x512xf32>
    %132 = vector.broadcast %63 : vector<1x512xf32> to vector<8x512xf32>
    %133 = arith.mulf %131, %132 : vector<8x512xf32>
    %c495_i32_37 = arith.constant 495 : i32
    %134 = tpu.dynamic_rotate %112 by %c495_i32_37 dim 1 : vector<8x512xf32>, i32 -> vector<8x512xf32>
    %135 = vector.broadcast %73 : vector<1x512xf32> to vector<8x512xf32>
    %136 = arith.mulf %134, %135 : vector<8x512xf32>
    %137 = tpu.concatenate %115, %118, %121, %124, %112, %127, %130, %133, %136 in 0 : vector<8x512xf32>, vector<8x512xf32>, vector<8x512xf32>, vector<8x512xf32>, vector<8x512xf32>, vector<8x512xf32>, vector<8x512xf32>, vector<8x512xf32>, vector<8x512xf32> -> vector<72x512xf32>
    %c40 = arith.constant 40 : index
    %c0_38 = arith.constant 0 : index
    %138 = vector.load %arg1[%c40, %c0_38] : memref<168x72xf32, #tpu.memory_space<vmem>>, vector<8x3xf32>
    %c32 = arith.constant 32 : index
    %c0_39 = arith.constant 0 : index
    %139 = vector.load %arg1[%c32, %c0_39] : memref<168x72xf32, #tpu.memory_space<vmem>>, vector<8x72xf32>
    %cst_40 = arith.constant dense<0.000000e+00> : vector<8x512xf32>
    %140 = tpu.matmul %139, %137, %cst_40 {dimension_numbers = #tpu.dot_dimension_numbers<[1], [0], [0], [1], [0, 0, 1, 1], [], []>} : vector<8x72xf32>, vector<72x512xf32>, vector<8x512xf32> -> vector<8x512xf32>
    %141 = vector.extract_strided_slice %138 {offsets = [0, 0], sizes = [8, 1], strides = [1, 1]} : vector<8x3xf32> to vector<8x1xf32>
    %142 = vector.broadcast %141 : vector<8x1xf32> to vector<8x512xf32>
    %143 = arith.addf %140, %142 : vector<8x512xf32>
    %cst_41 = arith.constant dense<0.000000e+00> : vector<8xf32>
    %144 = vector.multi_reduction <add>, %143, %cst_41 [1] : vector<8x512xf32> to vector<8xf32>
    %145 = vector.shape_cast %144 : vector<8xf32> to vector<8x1xf32>
    %146 = arith.mulf %143, %143 : vector<8x512xf32>
    %cst_42 = arith.constant dense<0.000000e+00> : vector<8xf32>
    %147 = vector.multi_reduction <add>, %146, %cst_42 [1] : vector<8x512xf32> to vector<8xf32>
    %148 = vector.shape_cast %147 : vector<8xf32> to vector<8x1xf32>
    %cst_43 = arith.constant 0.001953125 : f32
    %149 = vector.broadcast %cst_43 : f32 to vector<8x1xf32>
    %150 = arith.mulf %145, %149 : vector<8x1xf32>
    %cst_44 = arith.constant 0.001953125 : f32
    %151 = vector.broadcast %cst_44 : f32 to vector<8x1xf32>
    %152 = arith.mulf %148, %151 : vector<8x1xf32>
    %153 = arith.mulf %150, %150 : vector<8x1xf32>
    %154 = arith.subf %152, %153 : vector<8x1xf32>
    %cst_45 = arith.constant 0.000000e+00 : f32
    %155 = vector.broadcast %cst_45 : f32 to vector<8x1xf32>
    %156 = arith.maximumf %154, %155 : vector<8x1xf32>
    %157 = vector.broadcast %150 : vector<8x1xf32> to vector<8x512xf32>
    %158 = arith.subf %143, %157 : vector<8x512xf32>
    %cst_46 = arith.constant 9.99999974E-6 : f32
    %159 = vector.broadcast %cst_46 : f32 to vector<8x1xf32>
    %160 = arith.addf %156, %159 : vector<8x1xf32>
    %161 = math.rsqrt %160 : vector<8x1xf32>
    %162 = vector.extract_strided_slice %138 {offsets = [0, 1], sizes = [8, 1], strides = [1, 1]} : vector<8x3xf32> to vector<8x1xf32>
    %163 = arith.mulf %161, %162 : vector<8x1xf32>
    %164 = vector.broadcast %163 : vector<8x1xf32> to vector<8x512xf32>
    %165 = arith.mulf %158, %164 : vector<8x512xf32>
    %166 = vector.extract_strided_slice %138 {offsets = [0, 2], sizes = [8, 1], strides = [1, 1]} : vector<8x3xf32> to vector<8x1xf32>
    %167 = vector.broadcast %166 : vector<8x1xf32> to vector<8x512xf32>
    %168 = arith.addf %165, %167 : vector<8x512xf32>
    %cst_47 = arith.constant 0.000000e+00 : f32
    %169 = vector.broadcast %cst_47 : f32 to vector<8x512xf32>
    %170 = arith.cmpf oge, %168, %169 : vector<8x512xf32>
    %cst_48 = arith.constant 2.000000e-01 : f32
    %171 = vector.broadcast %cst_48 : f32 to vector<8x512xf32>
    %172 = arith.mulf %171, %168 : vector<8x512xf32>
    %173 = arith.select %170, %168, %172 : vector<8x512xi1>, vector<8x512xf32>
    %c0_49 = arith.constant 0 : index
    %c0_50 = arith.constant 0 : index
    %174 = vector.load %arg3[%c0_49, %c0_50] : memref<512x128xbf16, #tpu.memory_space<vmem>>, vector<512x128xbf16>
    %175 = arith.extf %174 : vector<512x128xbf16> to vector<512x128xf32>
    %cst_51 = arith.constant dense<0.000000e+00> : vector<8x128xf32>
    %176 = tpu.matmul %173, %175, %cst_51 {dimension_numbers = #tpu.dot_dimension_numbers<[1], [0], [0], [1], [0, 0, 1, 1], [], []>} : vector<8x512xf32>, vector<512x128xf32>, vector<8x128xf32> -> vector<8x128xf32>
    %c8_52 = arith.constant 8 : index
    %c0_53 = arith.constant 0 : index
    %177 = vector.load %arg2[%c8_52, %c0_53] : memref<16x512xf32, #tpu.memory_space<vmem>>, vector<1x128xf32>
    %c9 = arith.constant 9 : index
    %c0_54 = arith.constant 0 : index
    %178 = vector.load %arg2[%c9, %c0_54] : memref<16x512xf32, #tpu.memory_space<vmem>>, vector<1x128xf32>
    %c9_i32 = arith.constant 9 : i32
    %179 = tpu.dynamic_rotate %176 by %c9_i32 dim 1 : vector<8x128xf32>, i32 -> vector<8x128xf32>
    %cst_55 = arith.constant 1.000000e+00 : f32
    %180 = vector.broadcast %cst_55 : f32 to vector<1x128xf32>
    %181 = arith.cmpf oge, %177, %180 : vector<1x128xf32>
    %cst_56 = arith.constant 1.000000e+00 : f32
    %182 = vector.broadcast %cst_56 : f32 to vector<1x128xf32>
    %183 = arith.cmpf oge, %178, %182 : vector<1x128xf32>
    %184 = arith.andi %181, %183 : vector<1x128xi1>
    %185 = arith.extui %184 : vector<1x128xi1> to vector<1x128xi32>
    %186 = arith.sitofp %185 : vector<1x128xi32> to vector<1x128xf32>
    %187 = vector.broadcast %186 : vector<1x128xf32> to vector<8x128xf32>
    %188 = arith.mulf %179, %187 : vector<8x128xf32>
    %c8_i32 = arith.constant 8 : i32
    %189 = tpu.dynamic_rotate %176 by %c8_i32 dim 1 : vector<8x128xf32>, i32 -> vector<8x128xf32>
    %cst_57 = arith.constant 1.000000e+00 : f32
    %190 = vector.broadcast %cst_57 : f32 to vector<1x128xf32>
    %191 = arith.cmpf oge, %177, %190 : vector<1x128xf32>
    %192 = arith.extui %191 : vector<1x128xi1> to vector<1x128xi32>
    %193 = arith.sitofp %192 : vector<1x128xi32> to vector<1x128xf32>
    %194 = vector.broadcast %193 : vector<1x128xf32> to vector<8x128xf32>
    %195 = arith.mulf %189, %194 : vector<8x128xf32>
    %c7_i32 = arith.constant 7 : i32
    %196 = tpu.dynamic_rotate %176 by %c7_i32 dim 1 : vector<8x128xf32>, i32 -> vector<8x128xf32>
    %cst_58 = arith.constant 1.000000e+00 : f32
    %197 = vector.broadcast %cst_58 : f32 to vector<1x128xf32>
    %198 = arith.cmpf oge, %177, %197 : vector<1x128xf32>
    %cst_59 = arith.constant 7.000000e+00 : f32
    %199 = vector.broadcast %cst_59 : f32 to vector<1x128xf32>
    %200 = arith.cmpf olt, %178, %199 : vector<1x128xf32>
    %201 = arith.andi %198, %200 : vector<1x128xi1>
    %202 = arith.extui %201 : vector<1x128xi1> to vector<1x128xi32>
    %203 = arith.sitofp %202 : vector<1x128xi32> to vector<1x128xf32>
    %204 = vector.broadcast %203 : vector<1x128xf32> to vector<8x128xf32>
    %205 = arith.mulf %196, %204 : vector<8x128xf32>
    %c1_i32_60 = arith.constant 1 : i32
    %206 = tpu.dynamic_rotate %176 by %c1_i32_60 dim 1 : vector<8x128xf32>, i32 -> vector<8x128xf32>
    %cst_61 = arith.constant 1.000000e+00 : f32
    %207 = vector.broadcast %cst_61 : f32 to vector<1x128xf32>
    %208 = arith.cmpf oge, %178, %207 : vector<1x128xf32>
    %209 = arith.extui %208 : vector<1x128xi1> to vector<1x128xi32>
    %210 = arith.sitofp %209 : vector<1x128xi32> to vector<1x128xf32>
    %211 = vector.broadcast %210 : vector<1x128xf32> to vector<8x128xf32>
    %212 = arith.mulf %206, %211 : vector<8x128xf32>
    %c127_i32 = arith.constant 127 : i32
    %213 = tpu.dynamic_rotate %176 by %c127_i32 dim 1 : vector<8x128xf32>, i32 -> vector<8x128xf32>
    %cst_62 = arith.constant 7.000000e+00 : f32
    %214 = vector.broadcast %cst_62 : f32 to vector<1x128xf32>
    %215 = arith.cmpf olt, %178, %214 : vector<1x128xf32>
    %216 = arith.extui %215 : vector<1x128xi1> to vector<1x128xi32>
    %217 = arith.sitofp %216 : vector<1x128xi32> to vector<1x128xf32>
    %218 = vector.broadcast %217 : vector<1x128xf32> to vector<8x128xf32>
    %219 = arith.mulf %213, %218 : vector<8x128xf32>
    %c121_i32 = arith.constant 121 : i32
    %220 = tpu.dynamic_rotate %176 by %c121_i32 dim 1 : vector<8x128xf32>, i32 -> vector<8x128xf32>
    %cst_63 = arith.constant 7.000000e+00 : f32
    %221 = vector.broadcast %cst_63 : f32 to vector<1x128xf32>
    %222 = arith.cmpf olt, %177, %221 : vector<1x128xf32>
    %cst_64 = arith.constant 1.000000e+00 : f32
    %223 = vector.broadcast %cst_64 : f32 to vector<1x128xf32>
    %224 = arith.cmpf oge, %178, %223 : vector<1x128xf32>
    %225 = arith.andi %222, %224 : vector<1x128xi1>
    %226 = arith.extui %225 : vector<1x128xi1> to vector<1x128xi32>
    %227 = arith.sitofp %226 : vector<1x128xi32> to vector<1x128xf32>
    %228 = vector.broadcast %227 : vector<1x128xf32> to vector<8x128xf32>
    %229 = arith.mulf %220, %228 : vector<8x128xf32>
    %c120_i32 = arith.constant 120 : i32
    %230 = tpu.dynamic_rotate %176 by %c120_i32 dim 1 : vector<8x128xf32>, i32 -> vector<8x128xf32>
    %cst_65 = arith.constant 7.000000e+00 : f32
    %231 = vector.broadcast %cst_65 : f32 to vector<1x128xf32>
    %232 = arith.cmpf olt, %177, %231 : vector<1x128xf32>
    %233 = arith.extui %232 : vector<1x128xi1> to vector<1x128xi32>
    %234 = arith.sitofp %233 : vector<1x128xi32> to vector<1x128xf32>
    %235 = vector.broadcast %234 : vector<1x128xf32> to vector<8x128xf32>
    %236 = arith.mulf %230, %235 : vector<8x128xf32>
    %c119_i32 = arith.constant 119 : i32
    %237 = tpu.dynamic_rotate %176 by %c119_i32 dim 1 : vector<8x128xf32>, i32 -> vector<8x128xf32>
    %cst_66 = arith.constant 7.000000e+00 : f32
    %238 = vector.broadcast %cst_66 : f32 to vector<1x128xf32>
    %239 = arith.cmpf olt, %177, %238 : vector<1x128xf32>
    %cst_67 = arith.constant 7.000000e+00 : f32
    %240 = vector.broadcast %cst_67 : f32 to vector<1x128xf32>
    %241 = arith.cmpf olt, %178, %240 : vector<1x128xf32>
    %242 = arith.andi %239, %241 : vector<1x128xi1>
    %243 = arith.extui %242 : vector<1x128xi1> to vector<1x128xi32>
    %244 = arith.sitofp %243 : vector<1x128xi32> to vector<1x128xf32>
    %245 = vector.broadcast %244 : vector<1x128xf32> to vector<8x128xf32>
    %246 = arith.mulf %237, %245 : vector<8x128xf32>
    %247 = tpu.concatenate %188, %195, %205, %212, %176, %219, %229, %236, %246 in 0 : vector<8x128xf32>, vector<8x128xf32>, vector<8x128xf32>, vector<8x128xf32>, vector<8x128xf32>, vector<8x128xf32>, vector<8x128xf32>, vector<8x128xf32>, vector<8x128xf32> -> vector<72x128xf32>
    %c56 = arith.constant 56 : index
    %c0_68 = arith.constant 0 : index
    %248 = vector.load %arg1[%c56, %c0_68] : memref<168x72xf32, #tpu.memory_space<vmem>>, vector<8x3xf32>
    %c48 = arith.constant 48 : index
    %c0_69 = arith.constant 0 : index
    %249 = vector.load %arg1[%c48, %c0_69] : memref<168x72xf32, #tpu.memory_space<vmem>>, vector<8x72xf32>
    %cst_70 = arith.constant dense<0.000000e+00> : vector<8x128xf32>
    %250 = tpu.matmul %249, %247, %cst_70 {dimension_numbers = #tpu.dot_dimension_numbers<[1], [0], [0], [1], [0, 0, 1, 1], [], []>} : vector<8x72xf32>, vector<72x128xf32>, vector<8x128xf32> -> vector<8x128xf32>
    %251 = vector.extract_strided_slice %248 {offsets = [0, 0], sizes = [8, 1], strides = [1, 1]} : vector<8x3xf32> to vector<8x1xf32>
    %252 = vector.broadcast %251 : vector<8x1xf32> to vector<8x128xf32>
    %253 = arith.addf %250, %252 : vector<8x128xf32>
    %cst_71 = arith.constant dense<0.000000e+00> : vector<8xf32>
    %254 = vector.multi_reduction <add>, %253, %cst_71 [1] : vector<8x128xf32> to vector<8xf32>
    %255 = vector.shape_cast %254 : vector<8xf32> to vector<8x1xf32>
    %256 = arith.mulf %253, %253 : vector<8x128xf32>
    %cst_72 = arith.constant dense<0.000000e+00> : vector<8xf32>
    %257 = vector.multi_reduction <add>, %256, %cst_72 [1] : vector<8x128xf32> to vector<8xf32>
    %258 = vector.shape_cast %257 : vector<8xf32> to vector<8x1xf32>
    %cst_73 = arith.constant 7.812500e-03 : f32
    %259 = vector.broadcast %cst_73 : f32 to vector<8x1xf32>
    %260 = arith.mulf %255, %259 : vector<8x1xf32>
    %cst_74 = arith.constant 7.812500e-03 : f32
    %261 = vector.broadcast %cst_74 : f32 to vector<8x1xf32>
    %262 = arith.mulf %258, %261 : vector<8x1xf32>
    %263 = arith.mulf %260, %260 : vector<8x1xf32>
    %264 = arith.subf %262, %263 : vector<8x1xf32>
    %cst_75 = arith.constant 0.000000e+00 : f32
    %265 = vector.broadcast %cst_75 : f32 to vector<8x1xf32>
    %266 = arith.maximumf %264, %265 : vector<8x1xf32>
    %267 = vector.broadcast %260 : vector<8x1xf32> to vector<8x128xf32>
    %268 = arith.subf %253, %267 : vector<8x128xf32>
    %cst_76 = arith.constant 9.99999974E-6 : f32
    %269 = vector.broadcast %cst_76 : f32 to vector<8x1xf32>
    %270 = arith.addf %266, %269 : vector<8x1xf32>
    %271 = math.rsqrt %270 : vector<8x1xf32>
    %272 = vector.extract_strided_slice %248 {offsets = [0, 1], sizes = [8, 1], strides = [1, 1]} : vector<8x3xf32> to vector<8x1xf32>
    %273 = arith.mulf %271, %272 : vector<8x1xf32>
    %274 = vector.broadcast %273 : vector<8x1xf32> to vector<8x128xf32>
    %275 = arith.mulf %268, %274 : vector<8x128xf32>
    %276 = vector.extract_strided_slice %248 {offsets = [0, 2], sizes = [8, 1], strides = [1, 1]} : vector<8x3xf32> to vector<8x1xf32>
    %277 = vector.broadcast %276 : vector<8x1xf32> to vector<8x128xf32>
    %278 = arith.addf %275, %277 : vector<8x128xf32>
    %cst_77 = arith.constant 0.000000e+00 : f32
    %279 = vector.broadcast %cst_77 : f32 to vector<8x128xf32>
    %280 = arith.cmpf oge, %278, %279 : vector<8x128xf32>
    %cst_78 = arith.constant 2.000000e-01 : f32
    %281 = vector.broadcast %cst_78 : f32 to vector<8x128xf32>
    %282 = arith.mulf %281, %278 : vector<8x128xf32>
    %283 = arith.select %280, %278, %282 : vector<8x128xi1>, vector<8x128xf32>
    %c9_i32_79 = arith.constant 9 : i32
    %284 = tpu.dynamic_rotate %283 by %c9_i32_79 dim 1 : vector<8x128xf32>, i32 -> vector<8x128xf32>
    %285 = vector.broadcast %186 : vector<1x128xf32> to vector<8x128xf32>
    %286 = arith.mulf %284, %285 : vector<8x128xf32>
    %c8_i32_80 = arith.constant 8 : i32
    %287 = tpu.dynamic_rotate %283 by %c8_i32_80 dim 1 : vector<8x128xf32>, i32 -> vector<8x128xf32>
    %288 = vector.broadcast %193 : vector<1x128xf32> to vector<8x128xf32>
    %289 = arith.mulf %287, %288 : vector<8x128xf32>
    %c7_i32_81 = arith.constant 7 : i32
    %290 = tpu.dynamic_rotate %283 by %c7_i32_81 dim 1 : vector<8x128xf32>, i32 -> vector<8x128xf32>
    %291 = vector.broadcast %203 : vector<1x128xf32> to vector<8x128xf32>
    %292 = arith.mulf %290, %291 : vector<8x128xf32>
    %c1_i32_82 = arith.constant 1 : i32
    %293 = tpu.dynamic_rotate %283 by %c1_i32_82 dim 1 : vector<8x128xf32>, i32 -> vector<8x128xf32>
    %294 = vector.broadcast %210 : vector<1x128xf32> to vector<8x128xf32>
    %295 = arith.mulf %293, %294 : vector<8x128xf32>
    %c127_i32_83 = arith.constant 127 : i32
    %296 = tpu.dynamic_rotate %283 by %c127_i32_83 dim 1 : vector<8x128xf32>, i32 -> vector<8x128xf32>
    %297 = vector.broadcast %217 : vector<1x128xf32> to vector<8x128xf32>
    %298 = arith.mulf %296, %297 : vector<8x128xf32>
    %c121_i32_84 = arith.constant 121 : i32
    %299 = tpu.dynamic_rotate %283 by %c121_i32_84 dim 1 : vector<8x128xf32>, i32 -> vector<8x128xf32>
    %300 = vector.broadcast %227 : vector<1x128xf32> to vector<8x128xf32>
    %301 = arith.mulf %299, %300 : vector<8x128xf32>
    %c120_i32_85 = arith.constant 120 : i32
    %302 = tpu.dynamic_rotate %283 by %c120_i32_85 dim 1 : vector<8x128xf32>, i32 -> vector<8x128xf32>
    %303 = vector.broadcast %234 : vector<1x128xf32> to vector<8x128xf32>
    %304 = arith.mulf %302, %303 : vector<8x128xf32>
    %c119_i32_86 = arith.constant 119 : i32
    %305 = tpu.dynamic_rotate %283 by %c119_i32_86 dim 1 : vector<8x128xf32>, i32 -> vector<8x128xf32>
    %306 = vector.broadcast %244 : vector<1x128xf32> to vector<8x128xf32>
    %307 = arith.mulf %305, %306 : vector<8x128xf32>
    %308 = tpu.concatenate %286, %289, %292, %295, %283, %298, %301, %304, %307 in 0 : vector<8x128xf32>, vector<8x128xf32>, vector<8x128xf32>, vector<8x128xf32>, vector<8x128xf32>, vector<8x128xf32>, vector<8x128xf32>, vector<8x128xf32>, vector<8x128xf32> -> vector<72x128xf32>
    %c72 = arith.constant 72 : index
    %c0_87 = arith.constant 0 : index
    %309 = vector.load %arg1[%c72, %c0_87] : memref<168x72xf32, #tpu.memory_space<vmem>>, vector<8x3xf32>
    %c64 = arith.constant 64 : index
    %c0_88 = arith.constant 0 : index
    %310 = vector.load %arg1[%c64, %c0_88] : memref<168x72xf32, #tpu.memory_space<vmem>>, vector<8x72xf32>
    %cst_89 = arith.constant dense<0.000000e+00> : vector<8x128xf32>
    %311 = tpu.matmul %310, %308, %cst_89 {dimension_numbers = #tpu.dot_dimension_numbers<[1], [0], [0], [1], [0, 0, 1, 1], [], []>} : vector<8x72xf32>, vector<72x128xf32>, vector<8x128xf32> -> vector<8x128xf32>
    %312 = vector.extract_strided_slice %309 {offsets = [0, 0], sizes = [8, 1], strides = [1, 1]} : vector<8x3xf32> to vector<8x1xf32>
    %313 = vector.broadcast %312 : vector<8x1xf32> to vector<8x128xf32>
    %314 = arith.addf %311, %313 : vector<8x128xf32>
    %cst_90 = arith.constant dense<0.000000e+00> : vector<8xf32>
    %315 = vector.multi_reduction <add>, %314, %cst_90 [1] : vector<8x128xf32> to vector<8xf32>
    %316 = vector.shape_cast %315 : vector<8xf32> to vector<8x1xf32>
    %317 = arith.mulf %314, %314 : vector<8x128xf32>
    %cst_91 = arith.constant dense<0.000000e+00> : vector<8xf32>
    %318 = vector.multi_reduction <add>, %317, %cst_91 [1] : vector<8x128xf32> to vector<8xf32>
    %319 = vector.shape_cast %318 : vector<8xf32> to vector<8x1xf32>
    %cst_92 = arith.constant 7.812500e-03 : f32
    %320 = vector.broadcast %cst_92 : f32 to vector<8x1xf32>
    %321 = arith.mulf %316, %320 : vector<8x1xf32>
    %cst_93 = arith.constant 7.812500e-03 : f32
    %322 = vector.broadcast %cst_93 : f32 to vector<8x1xf32>
    %323 = arith.mulf %319, %322 : vector<8x1xf32>
    %324 = arith.mulf %321, %321 : vector<8x1xf32>
    %325 = arith.subf %323, %324 : vector<8x1xf32>
    %cst_94 = arith.constant 0.000000e+00 : f32
    %326 = vector.broadcast %cst_94 : f32 to vector<8x1xf32>
    %327 = arith.maximumf %325, %326 : vector<8x1xf32>
    %328 = vector.broadcast %321 : vector<8x1xf32> to vector<8x128xf32>
    %329 = arith.subf %314, %328 : vector<8x128xf32>
    %cst_95 = arith.constant 9.99999974E-6 : f32
    %330 = vector.broadcast %cst_95 : f32 to vector<8x1xf32>
    %331 = arith.addf %327, %330 : vector<8x1xf32>
    %332 = math.rsqrt %331 : vector<8x1xf32>
    %333 = vector.extract_strided_slice %309 {offsets = [0, 1], sizes = [8, 1], strides = [1, 1]} : vector<8x3xf32> to vector<8x1xf32>
    %334 = arith.mulf %332, %333 : vector<8x1xf32>
    %335 = vector.broadcast %334 : vector<8x1xf32> to vector<8x128xf32>
    %336 = arith.mulf %329, %335 : vector<8x128xf32>
    %337 = vector.extract_strided_slice %309 {offsets = [0, 2], sizes = [8, 1], strides = [1, 1]} : vector<8x3xf32> to vector<8x1xf32>
    %338 = vector.broadcast %337 : vector<8x1xf32> to vector<8x128xf32>
    %339 = arith.addf %336, %338 : vector<8x128xf32>
    %cst_96 = arith.constant 0.000000e+00 : f32
    %340 = vector.broadcast %cst_96 : f32 to vector<8x128xf32>
    %341 = arith.cmpf oge, %339, %340 : vector<8x128xf32>
    %cst_97 = arith.constant 2.000000e-01 : f32
    %342 = vector.broadcast %cst_97 : f32 to vector<8x128xf32>
    %343 = arith.mulf %342, %339 : vector<8x128xf32>
    %344 = arith.select %341, %339, %343 : vector<8x128xi1>, vector<8x128xf32>
    %345 = vector.extract_strided_slice %344 {offsets = [0, 0], sizes = [8, 64], strides = [1, 1]} : vector<8x128xf32> to vector<8x64xf32>
    %c80 = arith.constant 80 : index
    %c0_98 = arith.constant 0 : index
    %346 = vector.load %arg1[%c80, %c0_98] : memref<168x72xf32, #tpu.memory_space<vmem>>, vector<8x64xf32>
    %347 = vector.extract_strided_slice %345 {offsets = [0, 0], sizes = [1, 64], strides = [1, 1]} : vector<8x64xf32> to vector<1x64xf32>
    %348 = vector.broadcast %347 : vector<1x64xf32> to vector<8x64xf32>
    %349 = arith.mulf %346, %348 : vector<8x64xf32>
    %c88 = arith.constant 88 : index
    %c0_99 = arith.constant 0 : index
    %350 = vector.load %arg1[%c88, %c0_99] : memref<168x72xf32, #tpu.memory_space<vmem>>, vector<8x64xf32>
    %351 = vector.extract_strided_slice %345 {offsets = [1, 0], sizes = [1, 64], strides = [1, 1]} : vector<8x64xf32> to vector<1x64xf32>
    %352 = vector.broadcast %351 : vector<1x64xf32> to vector<8x64xf32>
    %353 = arith.mulf %350, %352 : vector<8x64xf32>
    %354 = arith.addf %349, %353 : vector<8x64xf32>
    %c96 = arith.constant 96 : index
    %c0_100 = arith.constant 0 : index
    %355 = vector.load %arg1[%c96, %c0_100] : memref<168x72xf32, #tpu.memory_space<vmem>>, vector<8x64xf32>
    %356 = vector.extract_strided_slice %345 {offsets = [2, 0], sizes = [1, 64], strides = [1, 1]} : vector<8x64xf32> to vector<1x64xf32>
    %357 = vector.broadcast %356 : vector<1x64xf32> to vector<8x64xf32>
    %358 = arith.mulf %355, %357 : vector<8x64xf32>
    %359 = arith.addf %354, %358 : vector<8x64xf32>
    %c104 = arith.constant 104 : index
    %c0_101 = arith.constant 0 : index
    %360 = vector.load %arg1[%c104, %c0_101] : memref<168x72xf32, #tpu.memory_space<vmem>>, vector<8x64xf32>
    %361 = vector.extract_strided_slice %345 {offsets = [3, 0], sizes = [1, 64], strides = [1, 1]} : vector<8x64xf32> to vector<1x64xf32>
    %362 = vector.broadcast %361 : vector<1x64xf32> to vector<8x64xf32>
    %363 = arith.mulf %360, %362 : vector<8x64xf32>
    %364 = arith.addf %359, %363 : vector<8x64xf32>
    %c112 = arith.constant 112 : index
    %c0_102 = arith.constant 0 : index
    %365 = vector.load %arg1[%c112, %c0_102] : memref<168x72xf32, #tpu.memory_space<vmem>>, vector<8x64xf32>
    %366 = vector.extract_strided_slice %345 {offsets = [4, 0], sizes = [1, 64], strides = [1, 1]} : vector<8x64xf32> to vector<1x64xf32>
    %367 = vector.broadcast %366 : vector<1x64xf32> to vector<8x64xf32>
    %368 = arith.mulf %365, %367 : vector<8x64xf32>
    %369 = arith.addf %364, %368 : vector<8x64xf32>
    %c120 = arith.constant 120 : index
    %c0_103 = arith.constant 0 : index
    %370 = vector.load %arg1[%c120, %c0_103] : memref<168x72xf32, #tpu.memory_space<vmem>>, vector<8x64xf32>
    %371 = vector.extract_strided_slice %345 {offsets = [5, 0], sizes = [1, 64], strides = [1, 1]} : vector<8x64xf32> to vector<1x64xf32>
    %372 = vector.broadcast %371 : vector<1x64xf32> to vector<8x64xf32>
    %373 = arith.mulf %370, %372 : vector<8x64xf32>
    %374 = arith.addf %369, %373 : vector<8x64xf32>
    %c128 = arith.constant 128 : index
    %c0_104 = arith.constant 0 : index
    %375 = vector.load %arg1[%c128, %c0_104] : memref<168x72xf32, #tpu.memory_space<vmem>>, vector<8x64xf32>
    %376 = vector.extract_strided_slice %345 {offsets = [6, 0], sizes = [1, 64], strides = [1, 1]} : vector<8x64xf32> to vector<1x64xf32>
    %377 = vector.broadcast %376 : vector<1x64xf32> to vector<8x64xf32>
    %378 = arith.mulf %375, %377 : vector<8x64xf32>
    %379 = arith.addf %374, %378 : vector<8x64xf32>
    %c136 = arith.constant 136 : index
    %c0_105 = arith.constant 0 : index
    %380 = vector.load %arg1[%c136, %c0_105] : memref<168x72xf32, #tpu.memory_space<vmem>>, vector<8x64xf32>
    %381 = vector.extract_strided_slice %345 {offsets = [7, 0], sizes = [1, 64], strides = [1, 1]} : vector<8x64xf32> to vector<1x64xf32>
    %382 = vector.broadcast %381 : vector<1x64xf32> to vector<8x64xf32>
    %383 = arith.mulf %380, %382 : vector<8x64xf32>
    %384 = arith.addf %379, %383 : vector<8x64xf32>
    %cst_106 = arith.constant dense<0.000000e+00> : vector<8xf32>
    %385 = vector.multi_reduction <add>, %384, %cst_106 [1] : vector<8x64xf32> to vector<8xf32>
    %386 = vector.shape_cast %385 : vector<8xf32> to vector<8x1xf32>
    %387 = vector.extract_strided_slice %344 {offsets = [0, 64], sizes = [8, 64], strides = [1, 1]} : vector<8x128xf32> to vector<8x64xf32>
    %c80_107 = arith.constant 80 : index
    %c0_108 = arith.constant 0 : index
    %388 = vector.load %arg1[%c80_107, %c0_108] : memref<168x72xf32, #tpu.memory_space<vmem>>, vector<8x64xf32>
    %389 = vector.extract_strided_slice %387 {offsets = [0, 0], sizes = [1, 64], strides = [1, 1]} : vector<8x64xf32> to vector<1x64xf32>
    %390 = vector.broadcast %389 : vector<1x64xf32> to vector<8x64xf32>
    %391 = arith.mulf %388, %390 : vector<8x64xf32>
    %c88_109 = arith.constant 88 : index
    %c0_110 = arith.constant 0 : index
    %392 = vector.load %arg1[%c88_109, %c0_110] : memref<168x72xf32, #tpu.memory_space<vmem>>, vector<8x64xf32>
    %393 = vector.extract_strided_slice %387 {offsets = [1, 0], sizes = [1, 64], strides = [1, 1]} : vector<8x64xf32> to vector<1x64xf32>
    %394 = vector.broadcast %393 : vector<1x64xf32> to vector<8x64xf32>
    %395 = arith.mulf %392, %394 : vector<8x64xf32>
    %396 = arith.addf %391, %395 : vector<8x64xf32>
    %c96_111 = arith.constant 96 : index
    %c0_112 = arith.constant 0 : index
    %397 = vector.load %arg1[%c96_111, %c0_112] : memref<168x72xf32, #tpu.memory_space<vmem>>, vector<8x64xf32>
    %398 = vector.extract_strided_slice %387 {offsets = [2, 0], sizes = [1, 64], strides = [1, 1]} : vector<8x64xf32> to vector<1x64xf32>
    %399 = vector.broadcast %398 : vector<1x64xf32> to vector<8x64xf32>
    %400 = arith.mulf %397, %399 : vector<8x64xf32>
    %401 = arith.addf %396, %400 : vector<8x64xf32>
    %c104_113 = arith.constant 104 : index
    %c0_114 = arith.constant 0 : index
    %402 = vector.load %arg1[%c104_113, %c0_114] : memref<168x72xf32, #tpu.memory_space<vmem>>, vector<8x64xf32>
    %403 = vector.extract_strided_slice %387 {offsets = [3, 0], sizes = [1, 64], strides = [1, 1]} : vector<8x64xf32> to vector<1x64xf32>
    %404 = vector.broadcast %403 : vector<1x64xf32> to vector<8x64xf32>
    %405 = arith.mulf %402, %404 : vector<8x64xf32>
    %406 = arith.addf %401, %405 : vector<8x64xf32>
    %c112_115 = arith.constant 112 : index
    %c0_116 = arith.constant 0 : index
    %407 = vector.load %arg1[%c112_115, %c0_116] : memref<168x72xf32, #tpu.memory_space<vmem>>, vector<8x64xf32>
    %408 = vector.extract_strided_slice %387 {offsets = [4, 0], sizes = [1, 64], strides = [1, 1]} : vector<8x64xf32> to vector<1x64xf32>
    %409 = vector.broadcast %408 : vector<1x64xf32> to vector<8x64xf32>
    %410 = arith.mulf %407, %409 : vector<8x64xf32>
    %411 = arith.addf %406, %410 : vector<8x64xf32>
    %c120_117 = arith.constant 120 : index
    %c0_118 = arith.constant 0 : index
    %412 = vector.load %arg1[%c120_117, %c0_118] : memref<168x72xf32, #tpu.memory_space<vmem>>, vector<8x64xf32>
    %413 = vector.extract_strided_slice %387 {offsets = [5, 0], sizes = [1, 64], strides = [1, 1]} : vector<8x64xf32> to vector<1x64xf32>
    %414 = vector.broadcast %413 : vector<1x64xf32> to vector<8x64xf32>
    %415 = arith.mulf %412, %414 : vector<8x64xf32>
    %416 = arith.addf %411, %415 : vector<8x64xf32>
    %c128_119 = arith.constant 128 : index
    %c0_120 = arith.constant 0 : index
    %417 = vector.load %arg1[%c128_119, %c0_120] : memref<168x72xf32, #tpu.memory_space<vmem>>, vector<8x64xf32>
    %418 = vector.extract_strided_slice %387 {offsets = [6, 0], sizes = [1, 64], strides = [1, 1]} : vector<8x64xf32> to vector<1x64xf32>
    %419 = vector.broadcast %418 : vector<1x64xf32> to vector<8x64xf32>
    %420 = arith.mulf %417, %419 : vector<8x64xf32>
    %421 = arith.addf %416, %420 : vector<8x64xf32>
    %c136_121 = arith.constant 136 : index
    %c0_122 = arith.constant 0 : index
    %422 = vector.load %arg1[%c136_121, %c0_122] : memref<168x72xf32, #tpu.memory_space<vmem>>, vector<8x64xf32>
    %423 = vector.extract_strided_slice %387 {offsets = [7, 0], sizes = [1, 64], strides = [1, 1]} : vector<8x64xf32> to vector<1x64xf32>
    %424 = vector.broadcast %423 : vector<1x64xf32> to vector<8x64xf32>
    %425 = arith.mulf %422, %424 : vector<8x64xf32>
    %426 = arith.addf %421, %425 : vector<8x64xf32>
    %cst_123 = arith.constant dense<0.000000e+00> : vector<8xf32>
    %427 = vector.multi_reduction <add>, %426, %cst_123 [1] : vector<8x64xf32> to vector<8xf32>
    %428 = vector.shape_cast %427 : vector<8xf32> to vector<8x1xf32>
    %429 = tpu.concatenate %386, %428 in 1 : vector<8x1xf32>, vector<8x1xf32> -> vector<8x2xf32>
    %c144 = arith.constant 144 : index
    %c0_124 = arith.constant 0 : index
    %430 = vector.load %arg1[%c144, %c0_124] : memref<168x72xf32, #tpu.memory_space<vmem>>, vector<8x1xf32>
    %431 = vector.broadcast %430 : vector<8x1xf32> to vector<8x2xf32>
    %432 = arith.addf %429, %431 : vector<8x2xf32>
    %cst_125 = arith.constant 0.000000e+00 : f32
    %433 = vector.broadcast %cst_125 : f32 to vector<8x2xf32>
    %434 = arith.cmpf oge, %432, %433 : vector<8x2xf32>
    %cst_126 = arith.constant 2.000000e-01 : f32
    %435 = vector.broadcast %cst_126 : f32 to vector<8x2xf32>
    %436 = arith.mulf %435, %432 : vector<8x2xf32>
    %437 = arith.select %434, %432, %436 : vector<8x2xi1>, vector<8x2xf32>
    %c152 = arith.constant 152 : index
    %c0_127 = arith.constant 0 : index
    %438 = vector.load %arg1[%c152, %c0_127] : memref<168x72xf32, #tpu.memory_space<vmem>>, vector<8x1xf32>
    %439 = vector.broadcast %438 : vector<8x1xf32> to vector<8x2xf32>
    %440 = arith.mulf %439, %437 : vector<8x2xf32>
    %cst_128 = arith.constant dense<0.000000e+00> : vector<2xf32>
    %441 = vector.multi_reduction <add>, %440, %cst_128 [0] : vector<8x2xf32> to vector<2xf32>
    %442 = vector.shape_cast %441 : vector<2xf32> to vector<1x2xf32>
    %c160 = arith.constant 160 : index
    %c0_129 = arith.constant 0 : index
    %443 = vector.load %arg1[%c160, %c0_129] : memref<168x72xf32, #tpu.memory_space<vmem>>, vector<1x1xf32>
    %444 = vector.broadcast %443 : vector<1x1xf32> to vector<1x2xf32>
    %445 = arith.addf %442, %444 : vector<1x2xf32>
    %c0_130 = arith.constant 0 : index
    %c0_131 = arith.constant 0 : index
    %446 = vector.load %arg4[%c0_130, %c0_131] : memref<1x2xf32, #tpu.memory_space<vmem>>, vector<1x2xf32>
    tpu.vector_store %arg4[%c0_130, %c0_131], %445 {strides = array<i32>} : memref<1x2xf32, #tpu.memory_space<vmem>>, vector<1x2xf32>,
    return
  }
}

</mosaic_0001>

<llo_original>
// kernel: tpu_custom_call.1
$region0: #{tpu_custom_call.1}
  #allocation0 [shape = 'u32[]', space=smem, size = 0x4, offset = 0x4, fixed_abs, tag = 'smem constant byte address 0x4 - core index']
  #allocation1 [shape = 'u32[144,128]{1,0:T(1,128)}', space=vmem, size = 0x12000, scoped, tag = 'internal scratch']
  %s0 = inlined_call_operand.hbm [shape: f32[8,128], index: 0, kind: input, shape index: {}]
  %s1 = inlined_call_operand.hbm [shape: f32[8,128], index: 1, kind: output, shape index: {}]
  %s2 = sld [smem:[#allocation0]]
  $region18: #{tpu_custom_call.1} parent=0
    _
  %s4 = ssub.s32 1, %s2
  %s5 = scalar_select 0, %s4, %s2
  $region1: #{tpu_custom_call.1} parent=0
    #allocation2 [shape = 'u8[4096]{0}', space=vmem, size = 0x1000, scoped, tag = 'input window, operand 0, single buffered']
    #allocation3 [shape = 's32[1]{0}', space=sflag, size = 0x4, scoped, tag = 'scoped memory for tpu_custom_call.1']
    #allocation4 [shape = 's32[1]{0}', space=sflag, size = 0x4, scoped, tag = 'scoped memory for tpu_custom_call.1']
    #allocation5 [shape = 'u8[4096]{0}', space=vmem, size = 0x1000, scoped, tag = 'output window, operand 0, single buffered']
    %6 = vsyncpa [#allocation3], 0
    %7 = vsyncpa [#allocation4], 0
    // Predicated region
    $region2: #{tpu_custom_call.1} parent=1 // pred_check
      _
    $region3: #{tpu_custom_call.1} parent=1 // pred_check_branch
      %9 = sbr.rel (0) target = $region5
    $region4: #{tpu_custom_call.1} parent=1 // pred_region
      %s11 = ssub.s32 128, 128
      %12 = vsyncadd [#allocation3], %s11
      %s14 = sshll.u32 [#allocation2], 4
      %s15 = int_to_ptr.vmem [resolvable:$true] %s14
      %17 = dma.hbm_to_vmem [thread:$0]  %s0, 128, %s15, [#allocation3]
    $region5: #{tpu_custom_call.1} parent=1 // pred_fallthru
      _
    // Predicated region
    $region6: #{tpu_custom_call.1} parent=1 // pred_check
      _
    $region7: #{tpu_custom_call.1} parent=1 // pred_check_branch
      %19 = sbr.rel (0) target = $region9
    $region8: #{tpu_custom_call.1} parent=1 // pred_region
      %20 = dma.done [#allocation3], 128
    $region9: #{tpu_custom_call.1} parent=1 // pred_fallthru
      _
    %v21 = vld [vmem:[#allocation2] sm:$0xff]
    %22 = vrot.lane.b32.xlu0 %v21, 1
    %v23 = vpop.permute.xlu0 %22
    %24 = vst [vmem:[#allocation5] sm:$0xff] %v23
    // Predicated region
    $region10: #{tpu_custom_call.1} parent=1 // pred_check
      _
    $region11: #{tpu_custom_call.1} parent=1 // pred_check_branch
      %26 = sbr.rel (0) target = $region13
    $region12: #{tpu_custom_call.1} parent=1 // pred_region
      %s28 = ssub.s32 128, 128
      %29 = vsyncadd [#allocation4], %s28
      %s31 = sshll.u32 [#allocation5], 4
      %s32 = int_to_ptr.vmem [resolvable:$true] %s31
      %34 = dma.vmem_to_hbm [thread:$0]  %s32, 128, %s1, [#allocation4]
    $region13: #{tpu_custom_call.1} parent=1 // pred_fallthru
      _
    // Predicated region
    $region14: #{tpu_custom_call.1} parent=1 // pred_check
      _
    $region15: #{tpu_custom_call.1} parent=1 // pred_check_branch
      %36 = sbr.rel (0) target = $region17
    $region16: #{tpu_custom_call.1} parent=1 // pred_region
      %37 = dma.done [#allocation4], 128
    $region17: #{tpu_custom_call.1} parent=1 // pred_fallthru
      _
    %38 = vsyncpa [#allocation3], 1
    %39 = vsyncpa [#allocation4], 1

// kernel: _lambda_.1
$region0: #{_lambda_.1}
  #allocation0 [shape = 'u32[]', space=smem, size = 0x4, offset = 0x4, fixed_abs, tag = 'smem constant byte address 0x4 - core index']
  #allocation1 [shape = 'u32[144,128]{1,0:T(1,128)}', space=vmem, size = 0x12000, scoped, tag = 'internal scratch']
  %s0 = inlined_call_operand.vmem [shape: f32[3,512], index: 0, kind: input, shape index: {}]
  %s1 = inlined_call_operand.vmem [shape: f32[168,72], index: 1, kind: input, shape index: {}]
  %s2 = inlined_call_operand.vmem [shape: f32[16,512], index: 2, kind: input, shape index: {}]
  %s3 = inlined_call_operand.vmem [shape: bf16[512,128], index: 3, kind: input, shape index: {}]
  %s4 = inlined_call_operand.hbm [shape: f32[1,2], index: 4, kind: output, shape index: {}]
  %s5 = sld [smem:[#allocation0]]
  $region26: #{_lambda_.1} parent=0
    _
  %s7 = ssub.s32 1, %s5
  %s8 = scalar_select 0, %s7, %s5
  $region1: #{_lambda_.1} parent=0
    #allocation2 [shape = 'u8[512]{0}', space=vmem, size = 0x400, scoped, tag = 'output window, operand 0, single buffered']
    #allocation3 [shape = 's32[1]{0}', space=sflag, size = 0x4, scoped, tag = 'scoped memory for _lambda_.1']
    %9 = vsyncpa [#allocation3], 0
    // Predicated region
    $region2: #{_lambda_.1} parent=1 // pred_check
      _
    $region3: #{_lambda_.1} parent=1 // pred_check_branch
      %11 = sbr.rel (0) target = $region5
    $region4: #{_lambda_.1} parent=1 // pred_region
      _
    $region5: #{_lambda_.1} parent=1 // pred_fallthru
      _
    // Predicated region
    $region6: #{_lambda_.1} parent=1 // pred_check
      _
    $region7: #{_lambda_.1} parent=1 // pred_check_branch
      %13 = sbr.rel (0) target = $region9
    $region8: #{_lambda_.1} parent=1 // pred_region
      _
    $region9: #{_lambda_.1} parent=1 // pred_fallthru
      _
    // Predicated region
    $region10: #{_lambda_.1} parent=1 // pred_check
      _
    $region11: #{_lambda_.1} parent=1 // pred_check_branch
      %15 = sbr.rel (0) target = $region13
    $region12: #{_lambda_.1} parent=1 // pred_region
      _
    $region13: #{_lambda_.1} parent=1 // pred_fallthru
      _
    // Predicated region
    $region14: #{_lambda_.1} parent=1 // pred_check
      _
    $region15: #{_lambda_.1} parent=1 // pred_check_branch
      %17 = sbr.rel (0) target = $region17
    $region16: #{_lambda_.1} parent=1 // pred_region
      _
    $region17: #{_lambda_.1} parent=1 // pred_fallthru
      _
    %v18 = vld [vmem:[%s0] sm:$0x77]
    %v19 = vld [vmem:[%s0 + $0x8] sm:$0x77]
    %v20 = vld [vmem:[%s1] sm:$0xff]
    %v21 = vld [vmem:[%s1 + $0x8] sm:$0xff]
    %23 = vset.pattern.permute.xlu0 0
    %24 = vperm.xlu0 %23, %v21
    %v25 = vpop.permute.xlu0 %24
    %v29 = vcombine.high %v18, %v18
    %v30 = vcombine.high %v19, %v19
    %vm31 = vcmask 23552
    %v33 = vsel %vm31, %v20, 0
    %vm35 = vcmask 1042432
    %v36 = vsel %vm35, %v18, 0
    %v38 = vsel %vm35, %v29, 0
    %v40 = vsel %vm35, %v19, 0
    %v42 = vsel %vm35, %v30, 0
    %44 = vmatprep.subr.mxu0 0.0
    %45 = vmatpush1.msra.mxu0 0.0
    %46 = vmatprep.subr.mxu0 0.0
    %47 = vmatpush1.msra.mxu0 0.0
    %48 = vmatprep.subr.mxu0 0.0
    %49 = vmatpush1.msra.mxu0 0.0
    %50 = vmatprep.subr.mxu0 0.0
    %51 = vmatpush1.msra.mxu0 0.0
    %52 = vmatprep.subr.mxu0 0.0
    %53 = vmatpush1.msra.mxu0 0.0
    %54 = vmatprep.subr.mxu0 0.0
    %55 = vmatpush1.msra.mxu0 0.0
    %56 = vmatprep.subr.mxu0 0.0
    %57 = vmatpush1.msra.mxu0 0.0
    %58 = vmatprep.subr.mxu0 0.0
    %59 = vmatpush1.msra.mxu0 0.0
    %60 = vmatprep.subr.mxu0 0.0
    %61 = vmatpush1.msra.mxu0 0.0
    %62 = vmatprep.subr.mxu0 0.0
    %63 = vmatpush1.msra.mxu0 0.0
    %64 = vmatprep.subr.mxu0 0.0
    %65 = vmatpush1.msra.mxu0 0.0
    %66 = vmatprep.subr.mxu0 0.0
    %67 = vmatpush1.msra.mxu0 0.0
    %68 = vmatprep.subr.mxu0 0.0
    %69 = vmatpush1.msra.mxu0 0.0
    %70 = vmatprep.subr.mxu0 0.0
    %71 = vmatpush1.msra.mxu0 0.0
    %72 = vmatprep.subr.mxu0 0.0
    %73 = vmatpush1.msra.mxu0 0.0
    %74 = vmatprep.subr.mxu0 %v38
    %75 = vmatpush1.msra.mxu0 %v36
    %76 = vmatprep.subr.mxu0 0.0
    %77 = vmatpush2.msra.mxu0 0.0
    %78 = vmatprep.subr.mxu0 0.0
    %79 = vmatpush2.msra.mxu0 0.0
    %80 = vmatprep.subr.mxu0 0.0
    %81 = vmatpush2.msra.mxu0 0.0
    %82 = vmatprep.subr.mxu0 0.0
    %83 = vmatpush2.msra.mxu0 0.0
    %84 = vmatprep.subr.mxu0 0.0
    %85 = vmatpush2.msra.mxu0 0.0
    %86 = vmatprep.subr.mxu0 0.0
    %87 = vmatpush2.msra.mxu0 0.0
    %88 = vmatprep.subr.mxu0 0.0
    %89 = vmatpush2.msra.mxu0 0.0
    %90 = vmatprep.subr.mxu0 0.0
    %91 = vmatpush2.msra.mxu0 0.0
    %92 = vmatprep.subr.mxu0 0.0
    %93 = vmatpush2.msra.mxu0 0.0
    %94 = vmatprep.subr.mxu0 0.0
    %95 = vmatpush2.msra.mxu0 0.0
    %96 = vmatprep.subr.mxu0 0.0
    %97 = vmatpush2.msra.mxu0 0.0
    %98 = vmatprep.subr.mxu0 0.0
    %99 = vmatpush2.msra.mxu0 0.0
    %100 = vmatprep.subr.mxu0 0.0
    %101 = vmatpush2.msra.mxu0 0.0
    %102 = vmatprep.subr.mxu0 0.0
    %103 = vmatpush2.msra.mxu0 0.0
    %104 = vmatprep.subr.mxu0 0.0
    %105 = vmatpush2.msra.mxu0 0.0
    %106 = vmatprep.subr.mxu0 0.0
    %107 = vmatpush2.msra.mxu0 0.0
    %108 = vmatprep.mubr.f32.mxu0 0.0
    %109 = vmatmul.mubr.f32.gmra.mxu0 %v33
    %v110 = vpop.f32.mrf.mxu0
    %v111 = vadd.f32 %v25, %v110
    %v112 = vpop.f32.mrf.mxu0
    %v113 = vadd.f32 %v25, %v112
    %114 = vdwg.mxu0
    %115 = vmatprep.subr.mxu0 0.0
    %116 = vmatpush1.msra.mxu0 0.0
    %117 = vmatprep.subr.mxu0 0.0
    %118 = vmatpush1.msra.mxu0 0.0
    %119 = vmatprep.subr.mxu0 0.0
    %120 = vmatpush1.msra.mxu0 0.0
    %121 = vmatprep.subr.mxu0 0.0
    %122 = vmatpush1.msra.mxu0 0.0
    %123 = vmatprep.subr.mxu0 0.0
    %124 = vmatpush1.msra.mxu0 0.0
    %125 = vmatprep.subr.mxu0 0.0
    %126 = vmatpush1.msra.mxu0 0.0
    %127 = vmatprep.subr.mxu0 0.0
    %128 = vmatpush1.msra.mxu0 0.0
    %129 = vmatprep.subr.mxu0 0.0
    %130 = vmatpush1.msra.mxu0 0.0
    %131 = vmatprep.subr.mxu0 0.0
    %132 = vmatpush1.msra.mxu0 0.0
    %133 = vmatprep.subr.mxu0 0.0
    %134 = vmatpush1.msra.mxu0 0.0
    %135 = vmatprep.subr.mxu0 0.0
    %136 = vmatpush1.msra.mxu0 0.0
    %137 = vmatprep.subr.mxu0 0.0
    %138 = vmatpush1.msra.mxu0 0.0
    %139 = vmatprep.subr.mxu0 0.0
    %140 = vmatpush1.msra.mxu0 0.0
    %141 = vmatprep.subr.mxu0 0.0
    %142 = vmatpush1.msra.mxu0 0.0
    %143 = vmatprep.subr.mxu0 0.0
    %144 = vmatpush1.msra.mxu0 0.0
    %145 = vmatprep.subr.mxu0 %v42
    %146 = vmatpush1.msra.mxu0 %v40
    %147 = vmatprep.subr.mxu0 0.0
    %148 = vmatpush2.msra.mxu0 0.0
    %149 = vmatprep.subr.mxu0 0.0
    %150 = vmatpush2.msra.mxu0 0.0
    %151 = vmatprep.subr.mxu0 0.0
    %152 = vmatpush2.msra.mxu0 0.0
    %153 = vmatprep.subr.mxu0 0.0
    %154 = vmatpush2.msra.mxu0 0.0
    %155 = vmatprep.subr.mxu0 0.0
    %156 = vmatpush2.msra.mxu0 0.0
    %157 = vmatprep.subr.mxu0 0.0
    %158 = vmatpush2.msra.mxu0 0.0
    %159 = vmatprep.subr.mxu0 0.0
    %160 = vmatpush2.msra.mxu0 0.0
    %161 = vmatprep.subr.mxu0 0.0
    %162 = vmatpush2.msra.mxu0 0.0
    %163 = vmatprep.subr.mxu0 0.0
    %164 = vmatpush2.msra.mxu0 0.0
    %165 = vmatprep.subr.mxu0 0.0
    %166 = vmatpush2.msra.mxu0 0.0
    %167 = vmatprep.subr.mxu0 0.0
    %168 = vmatpush2.msra.mxu0 0.0
    %169 = vmatprep.subr.mxu0 0.0
    %170 = vmatpush2.msra.mxu0 0.0
    %171 = vmatprep.subr.mxu0 0.0
    %172 = vmatpush2.msra.mxu0 0.0
    %173 = vmatprep.subr.mxu0 0.0
    %174 = vmatpush2.msra.mxu0 0.0
    %175 = vmatprep.subr.mxu0 0.0
    %176 = vmatpush2.msra.mxu0 0.0
    %177 = vmatprep.subr.mxu0 0.0
    %178 = vmatpush2.msra.mxu0 0.0
    %179 = vmatprep.mubr.f32.mxu0 0.0
    %180 = vmatmul.mubr.f32.gmra.mxu0 %v33
    %v181 = vpop.f32.mrf.mxu0
    %v182 = vadd.f32 %v25, %v181
    %v183 = vpop.f32.mrf.mxu0
    %v184 = vadd.f32 %v25, %v183
    %185 = vdwg.mxu0
    %v186 = vld [vmem:[%s2] ss:$8 sm:$0xf]
    %s187 = scalar_lea.vmem %s2, 1
    %v188 = vld [vmem:[%s187] ss:$8 sm:$0xf]
    %189 = vrot.lane.b32.xlu0 %v111, 17
    %v190 = vpop.permute.xlu0 %189
    %191 = vrot.lane.b32.xlu0 %v113, 17
    %v192 = vpop.permute.xlu0 %191
    %193 = vrot.lane.b32.xlu0 %v182, 17
    %v194 = vpop.permute.xlu0 %193
    %195 = vrot.lane.b32.xlu0 %v184, 17
    %v196 = vpop.permute.xlu0 %195
    %v197 = vlaneseq
    %v198 = vand.u32 %v197, 127
    %vm199 = vcmp.lt.s32.totalorder %v198, 17
    %v200 = vsel %vm199, %v194, %v196
    %v201 = vsel %vm199, %v192, %v194
    %v202 = vsel %vm199, %v190, %v192
    %v203 = vsel %vm199, %v196, %v190
    %vm204 = vcmp.ge.f32.partialorder %v186, 1.0
    %vm205 = vcmp.ge.f32.partialorder %v188, 1.0
    %vm206 = vmand %vm204, %vm205
    %v207 = vsel %vm206, 1, 0
    %v208 = vcvt.s32.f32 %v207
    %v210 = vlaneseq
    %v211 = vshrl.u32 %v210, 7
    %v212 = vsub.s32 0, %v211
    %v213 = vrot.slane %v208, %v212
    %v214 = vlaneseq
    %v215 = vshrl.u32 %v214, 7
    %v216 = vsub.s32 1, %v215
    %v217 = vrot.slane %v208, %v216
    %v218 = vlaneseq
    %v219 = vshrl.u32 %v218, 7
    %v220 = vsub.s32 2, %v219
    %v221 = vrot.slane %v208, %v220
    %v222 = vlaneseq
    %v223 = vshrl.u32 %v222, 7
    %v224 = vsub.s32 3, %v223
    %v225 = vrot.slane %v208, %v224
    %v230 = vmul.f32 %v203, %v213
    %v231 = vmul.f32 %v202, %v217
    %v232 = vmul.f32 %v201, %v221
    %v233 = vmul.f32 %v200, %v225
    %234 = vrot.lane.b32.xlu0 %v111, 16
    %v235 = vpop.permute.xlu0 %234
    %236 = vrot.lane.b32.xlu0 %v113, 16
    %v237 = vpop.permute.xlu0 %236
    %238 = vrot.lane.b32.xlu0 %v182, 16
    %v239 = vpop.permute.xlu0 %238
    %240 = vrot.lane.b32.xlu0 %v184, 16
    %v241 = vpop.permute.xlu0 %240
    %vm242 = vcmp.lt.s32.totalorder %v198, 16
    %v243 = vsel %vm242, %v239, %v241
    %v244 = vsel %vm242, %v237, %v239
    %v245 = vsel %vm242, %v235, %v237
    %v246 = vsel %vm242, %v241, %v235
    %v247 = vsel %vm204, 1, 0
    %v248 = vcvt.s32.f32 %v247
    %v250 = vlaneseq
    %v251 = vshrl.u32 %v250, 7
    %v252 = vsub.s32 0, %v251
    %v253 = vrot.slane %v248, %v252
    %v254 = vlaneseq
    %v255 = vshrl.u32 %v254, 7
    %v256 = vsub.s32 1, %v255
    %v257 = vrot.slane %v248, %v256
    %v258 = vlaneseq
    %v259 = vshrl.u32 %v258, 7
    %v260 = vsub.s32 2, %v259
    %v261 = vrot.slane %v248, %v260
    %v262 = vlaneseq
    %v263 = vshrl.u32 %v262, 7
    %v264 = vsub.s32 3, %v263
    %v265 = vrot.slane %v248, %v264
    %v270 = vmul.f32 %v246, %v253
    %v271 = vmul.f32 %v245, %v257
    %v272 = vmul.f32 %v244, %v261
    %v273 = vmul.f32 %v243, %v265
    %274 = vrot.lane.b32.xlu0 %v111, 15
    %v275 = vpop.permute.xlu0 %274
    %276 = vrot.lane.b32.xlu0 %v113, 15
    %v277 = vpop.permute.xlu0 %276
    %278 = vrot.lane.b32.xlu0 %v182, 15
    %v279 = vpop.permute.xlu0 %278
    %280 = vrot.lane.b32.xlu0 %v184, 15
    %v281 = vpop.permute.xlu0 %280
    %vm282 = vcmp.lt.s32.totalorder %v198, 15
    %v283 = vsel %vm282, %v279, %v281
    %v284 = vsel %vm282, %v277, %v279
    %v285 = vsel %vm282, %v275, %v277
    %v286 = vsel %vm282, %v281, %v275
    %vm287 = vcmp.lt.f32.partialorder %v188, 15.0
    %vm288 = vmand %vm204, %vm287
    %v289 = vsel %vm288, 1, 0
    %v290 = vcvt.s32.f32 %v289
    %v292 = vlaneseq
    %v293 = vshrl.u32 %v292, 7
    %v294 = vsub.s32 0, %v293
    %v295 = vrot.slane %v290, %v294
    %v296 = vlaneseq
    %v297 = vshrl.u32 %v296, 7
    %v298 = vsub.s32 1, %v297
    %v299 = vrot.slane %v290, %v298
    %v300 = vlaneseq
    %v301 = vshrl.u32 %v300, 7
    %v302 = vsub.s32 2, %v301
    %v303 = vrot.slane %v290, %v302
    %v304 = vlaneseq
    %v305 = vshrl.u32 %v304, 7
    %v306 = vsub.s32 3, %v305
    %v307 = vrot.slane %v290, %v306
    %v312 = vmul.f32 %v286, %v295
    %v313 = vmul.f32 %v285, %v299
    %v314 = vmul.f32 %v284, %v303
    %v315 = vmul.f32 %v283, %v307
    %316 = vrot.lane.b32.xlu0 %v111, 1
    %v317 = vpop.permute.xlu0 %316
    %318 = vrot.lane.b32.xlu0 %v113, 1
    %v319 = vpop.permute.xlu0 %318
    %320 = vrot.lane.b32.xlu0 %v182, 1
    %v321 = vpop.permute.xlu0 %320
    %322 = vrot.lane.b32.xlu0 %v184, 1
    %v323 = vpop.permute.xlu0 %322
    %vm324 = vcmp.lt.s32.totalorder %v198, 1
    %v325 = vsel %vm324, %v321, %v323
    %v326 = vsel %vm324, %v319, %v321
    %v327 = vsel %vm324, %v317, %v319
    %v328 = vsel %vm324, %v323, %v317
    %v329 = vsel %vm205, 1, 0
    %v330 = vcvt.s32.f32 %v329
    %v332 = vlaneseq
    %v333 = vshrl.u32 %v332, 7
    %v334 = vsub.s32 0, %v333
    %v335 = vrot.slane %v330, %v334
    %v336 = vlaneseq
    %v337 = vshrl.u32 %v336, 7
    %v338 = vsub.s32 1, %v337
    %v339 = vrot.slane %v330, %v338
    %v340 = vlaneseq
    %v341 = vshrl.u32 %v340, 7
    %v342 = vsub.s32 2, %v341
    %v343 = vrot.slane %v330, %v342
    %v344 = vlaneseq
    %v345 = vshrl.u32 %v344, 7
    %v346 = vsub.s32 3, %v345
    %v347 = vrot.slane %v330, %v346
    %v352 = vmul.f32 %v328, %v335
    %v353 = vmul.f32 %v327, %v339
    %v354 = vmul.f32 %v326, %v343
    %v355 = vmul.f32 %v325, %v347
    %356 = vrot.lane.b32.xlu0 %v111, 127
    %v357 = vpop.permute.xlu0 %356
    %358 = vrot.lane.b32.xlu0 %v113, 127
    %v359 = vpop.permute.xlu0 %358
    %360 = vrot.lane.b32.xlu0 %v182, 127
    %v361 = vpop.permute.xlu0 %360
    %362 = vrot.lane.b32.xlu0 %v184, 127
    %v363 = vpop.permute.xlu0 %362
    %vm364 = vcmp.lt.s32.totalorder %v198, 127
    %v365 = vsel %vm364, %v361, %v363
    %v366 = vsel %vm364, %v359, %v361
    %v367 = vsel %vm364, %v357, %v359
    %v368 = vsel %vm364, %v363, %v357
    %v369 = vsel %vm287, 1, 0
    %v370 = vcvt.s32.f32 %v369
    %v372 = vlaneseq
    %v373 = vshrl.u32 %v372, 7
    %v374 = vsub.s32 0, %v373
    %v375 = vrot.slane %v370, %v374
    %v376 = vlaneseq
    %v377 = vshrl.u32 %v376, 7
    %v378 = vsub.s32 1, %v377
    %v379 = vrot.slane %v370, %v378
    %v380 = vlaneseq
    %v381 = vshrl.u32 %v380, 7
    %v382 = vsub.s32 2, %v381
    %v383 = vrot.slane %v370, %v382
    %v384 = vlaneseq
    %v385 = vshrl.u32 %v384, 7
    %v386 = vsub.s32 3, %v385
    %v387 = vrot.slane %v370, %v386
    %v392 = vmul.f32 %v367, %v375
    %v393 = vmul.f32 %v366, %v379
    %v394 = vmul.f32 %v365, %v383
    %v395 = vmul.f32 %v368, %v387
    %396 = vrot.lane.b32.xlu0 %v111, 113
    %v397 = vpop.permute.xlu0 %396
    %398 = vrot.lane.b32.xlu0 %v113, 113
    %v399 = vpop.permute.xlu0 %398
    %400 = vrot.lane.b32.xlu0 %v182, 113
    %v401 = vpop.permute.xlu0 %400
    %402 = vrot.lane.b32.xlu0 %v184, 113
    %v403 = vpop.permute.xlu0 %402
    %vm404 = vcmp.lt.s32.totalorder %v198, 113
    %v405 = vsel %vm404, %v401, %v403
    %v406 = vsel %vm404, %v399, %v401
    %v407 = vsel %vm404, %v397, %v399
    %v408 = vsel %vm404, %v403, %v397
    %vm409 = vcmp.lt.f32.partialorder %v186, 15.0
    %vm410 = vmand %vm409, %vm205
    %v411 = vsel %vm410, 1, 0
    %v412 = vcvt.s32.f32 %v411
    %v414 = vlaneseq
    %v415 = vshrl.u32 %v414, 7
    %v416 = vsub.s32 0, %v415
    %v417 = vrot.slane %v412, %v416
    %v418 = vlaneseq
    %v419 = vshrl.u32 %v418, 7
    %v420 = vsub.s32 1, %v419
    %v421 = vrot.slane %v412, %v420
    %v422 = vlaneseq
    %v423 = vshrl.u32 %v422, 7
    %v424 = vsub.s32 2, %v423
    %v425 = vrot.slane %v412, %v424
    %v426 = vlaneseq
    %v427 = vshrl.u32 %v426, 7
    %v428 = vsub.s32 3, %v427
    %v429 = vrot.slane %v412, %v428
    %v434 = vmul.f32 %v407, %v417
    %v435 = vmul.f32 %v406, %v421
    %v436 = vmul.f32 %v405, %v425
    %v437 = vmul.f32 %v408, %v429
    %438 = vrot.lane.b32.xlu0 %v111, 112
    %v439 = vpop.permute.xlu0 %438
    %440 = vrot.lane.b32.xlu0 %v113, 112
    %v441 = vpop.permute.xlu0 %440
    %442 = vrot.lane.b32.xlu0 %v182, 112
    %v443 = vpop.permute.xlu0 %442
    %444 = vrot.lane.b32.xlu0 %v184, 112
    %v445 = vpop.permute.xlu0 %444
    %vm446 = vcmp.lt.s32.totalorder %v198, 112
    %v447 = vsel %vm446, %v443, %v445
    %v448 = vsel %vm446, %v441, %v443
    %v449 = vsel %vm446, %v439, %v441
    %v450 = vsel %vm446, %v445, %v439
    %v451 = vsel %vm409, 1, 0
    %v452 = vcvt.s32.f32 %v451
    %v454 = vlaneseq
    %v455 = vshrl.u32 %v454, 7
    %v456 = vsub.s32 0, %v455
    %v457 = vrot.slane %v452, %v456
    %v458 = vlaneseq
    %v459 = vshrl.u32 %v458, 7
    %v460 = vsub.s32 1, %v459
    %v461 = vrot.slane %v452, %v460
    %v462 = vlaneseq
    %v463 = vshrl.u32 %v462, 7
    %v464 = vsub.s32 2, %v463
    %v465 = vrot.slane %v452, %v464
    %v466 = vlaneseq
    %v467 = vshrl.u32 %v466, 7
    %v468 = vsub.s32 3, %v467
    %v469 = vrot.slane %v452, %v468
    %v474 = vmul.f32 %v449, %v457
    %v475 = vmul.f32 %v448, %v461
    %v476 = vmul.f32 %v447, %v465
    %v477 = vmul.f32 %v450, %v469
    %478 = vrot.lane.b32.xlu0 %v111, 111
    %v479 = vpop.permute.xlu0 %478
    %480 = vrot.lane.b32.xlu0 %v113, 111
    %v481 = vpop.permute.xlu0 %480
    %482 = vrot.lane.b32.xlu0 %v182, 111
    %v483 = vpop.permute.xlu0 %482
    %484 = vrot.lane.b32.xlu0 %v184, 111
    %v485 = vpop.permute.xlu0 %484
    %vm486 = vcmp.lt.s32.totalorder %v198, 111
    %v487 = vsel %vm486, %v483, %v485
    %v488 = vsel %vm486, %v481, %v483
    %v489 = vsel %vm486, %v479, %v481
    %v490 = vsel %vm486, %v485, %v479
    %vm491 = vmand %vm409, %vm287
    %v492 = vsel %vm491, 1, 0
    %v493 = vcvt.s32.f32 %v492
    %v495 = vlaneseq
    %v496 = vshrl.u32 %v495, 7
    %v497 = vsub.s32 0, %v496
    %v498 = vrot.slane %v493, %v497
    %v499 = vlaneseq
    %v500 = vshrl.u32 %v499, 7
    %v501 = vsub.s32 1, %v500
    %v502 = vrot.slane %v493, %v501
    %v503 = vlaneseq
    %v504 = vshrl.u32 %v503, 7
    %v505 = vsub.s32 2, %v504
    %v506 = vrot.slane %v493, %v505
    %v507 = vlaneseq
    %v508 = vshrl.u32 %v507, 7
    %v509 = vsub.s32 3, %v508
    %v510 = vrot.slane %v493, %v509
    %v515 = vmul.f32 %v489, %v498
    %v516 = vmul.f32 %v488, %v502
    %v517 = vmul.f32 %v487, %v506
    %v518 = vmul.f32 %v490, %v510
    %v519 = vld [vmem:[%s1 + $0x18] sm:$0xff]
    %v520 = vld [vmem:[%s1 + $0x10] sm:$0xff]
    %522 = vset.pattern.permute.xlu0 0
    %523 = vperm.xlu0 %522, %v519
    %v524 = vpop.permute.xlu0 %523
    %vm526 = vcmask 588800
    %v528 = vsel %vm526, %v520, 0
    %530 = vmatprep.subr.mxu0 0.0
    %531 = vmatpush1.msra.mxu0 0.0
    %532 = vmatprep.subr.mxu0 0.0
    %533 = vmatpush1.msra.mxu0 0.0
    %534 = vmatprep.subr.mxu0 0.0
    %535 = vmatpush1.msra.mxu0 0.0
    %536 = vmatprep.subr.mxu0 0.0
    %537 = vmatpush1.msra.mxu0 0.0
    %538 = vmatprep.subr.mxu0 0.0
    %539 = vmatpush1.msra.mxu0 0.0
    %540 = vmatprep.subr.mxu0 0.0
    %541 = vmatpush1.msra.mxu0 0.0
    %542 = vmatprep.subr.mxu0 0.0
    %543 = vmatpush1.msra.mxu0 0.0
    %544 = vmatprep.subr.mxu0 %v516
    %545 = vmatpush1.msra.mxu0 %v515
    %546 = vmatprep.subr.mxu0 %v475
    %547 = vmatpush1.msra.mxu0 %v474
    %548 = vmatprep.subr.mxu0 %v435
    %549 = vmatpush1.msra.mxu0 %v434
    %550 = vmatprep.subr.mxu0 %v393
    %551 = vmatpush1.msra.mxu0 %v392
    %552 = vmatprep.subr.mxu0 %v113
    %553 = vmatpush1.msra.mxu0 %v111
    %554 = vmatprep.subr.mxu0 %v353
    %555 = vmatpush1.msra.mxu0 %v352
    %556 = vmatprep.subr.mxu0 %v313
    %557 = vmatpush1.msra.mxu0 %v312
    %558 = vmatprep.subr.mxu0 %v271
    %559 = vmatpush1.msra.mxu0 %v270
    %560 = vmatprep.subr.mxu0 %v231
    %561 = vmatpush1.msra.mxu0 %v230
    %562 = vmatprep.subr.mxu0 0.0
    %563 = vmatpush2.msra.mxu0 0.0
    %564 = vmatprep.subr.mxu0 0.0
    %565 = vmatpush2.msra.mxu0 0.0
    %566 = vmatprep.subr.mxu0 0.0
    %567 = vmatpush2.msra.mxu0 0.0
    %568 = vmatprep.subr.mxu0 0.0
    %569 = vmatpush2.msra.mxu0 0.0
    %570 = vmatprep.subr.mxu0 0.0
    %571 = vmatpush2.msra.mxu0 0.0
    %572 = vmatprep.subr.mxu0 0.0
    %573 = vmatpush2.msra.mxu0 0.0
    %574 = vmatprep.subr.mxu0 0.0
    %575 = vmatpush2.msra.mxu0 0.0
    %576 = vmatprep.subr.mxu0 0.0
    %577 = vmatpush2.msra.mxu0 0.0
    %578 = vmatprep.subr.mxu0 0.0
    %579 = vmatpush2.msra.mxu0 0.0
    %580 = vmatprep.subr.mxu0 0.0
    %581 = vmatpush2.msra.mxu0 0.0
    %582 = vmatprep.subr.mxu0 0.0
    %583 = vmatpush2.msra.mxu0 0.0
    %584 = vmatprep.subr.mxu0 0.0
    %585 = vmatpush2.msra.mxu0 0.0
    %586 = vmatprep.subr.mxu0 0.0
    %587 = vmatpush2.msra.mxu0 0.0
    %588 = vmatprep.subr.mxu0 0.0
    %589 = vmatpush2.msra.mxu0 0.0
    %590 = vmatprep.subr.mxu0 0.0
    %591 = vmatpush2.msra.mxu0 0.0
    %592 = vmatprep.subr.mxu0 0.0
    %593 = vmatpush2.msra.mxu0 0.0
    %594 = vmatprep.mubr.f32.mxu0 0.0
    %595 = vmatmul.mubr.f32.gmra.mxu0 %v528
    %v596 = vpop.f32.mrf.mxu0
    %v597 = vadd.f32 %v524, %v596
    %v598 = vpop.f32.mrf.mxu0
    %v599 = vadd.f32 %v524, %v598
    %600 = vdwg.mxu0
    %601 = vmatprep.subr.mxu0 0.0
    %602 = vmatpush1.msra.mxu0 0.0
    %603 = vmatprep.subr.mxu0 0.0
    %604 = vmatpush1.msra.mxu0 0.0
    %605 = vmatprep.subr.mxu0 0.0
    %606 = vmatpush1.msra.mxu0 0.0
    %607 = vmatprep.subr.mxu0 0.0
    %608 = vmatpush1.msra.mxu0 0.0
    %609 = vmatprep.subr.mxu0 0.0
    %610 = vmatpush1.msra.mxu0 0.0
    %611 = vmatprep.subr.mxu0 0.0
    %612 = vmatpush1.msra.mxu0 0.0
    %613 = vmatprep.subr.mxu0 0.0
    %614 = vmatpush1.msra.mxu0 0.0
    %615 = vmatprep.subr.mxu0 %v518
    %616 = vmatpush1.msra.mxu0 %v517
    %617 = vmatprep.subr.mxu0 %v477
    %618 = vmatpush1.msra.mxu0 %v476
    %619 = vmatprep.subr.mxu0 %v437
    %620 = vmatpush1.msra.mxu0 %v436
    %621 = vmatprep.subr.mxu0 %v395
    %622 = vmatpush1.msra.mxu0 %v394
    %623 = vmatprep.subr.mxu0 %v184
    %624 = vmatpush1.msra.mxu0 %v182
    %625 = vmatprep.subr.mxu0 %v355
    %626 = vmatpush1.msra.mxu0 %v354
    %627 = vmatprep.subr.mxu0 %v315
    %628 = vmatpush1.msra.mxu0 %v314
    %629 = vmatprep.subr.mxu0 %v273
    %630 = vmatpush1.msra.mxu0 %v272
    %631 = vmatprep.subr.mxu0 %v233
    %632 = vmatpush1.msra.mxu0 %v232
    %633 = vmatprep.subr.mxu0 0.0
    %634 = vmatpush2.msra.mxu0 0.0
    %635 = vmatprep.subr.mxu0 0.0
    %636 = vmatpush2.msra.mxu0 0.0
    %637 = vmatprep.subr.mxu0 0.0
    %638 = vmatpush2.msra.mxu0 0.0
    %639 = vmatprep.subr.mxu0 0.0
    %640 = vmatpush2.msra.mxu0 0.0
    %641 = vmatprep.subr.mxu0 0.0
    %642 = vmatpush2.msra.mxu0 0.0
    %643 = vmatprep.subr.mxu0 0.0
    %644 = vmatpush2.msra.mxu0 0.0
    %645 = vmatprep.subr.mxu0 0.0
    %646 = vmatpush2.msra.mxu0 0.0
    %647 = vmatprep.subr.mxu0 0.0
    %648 = vmatpush2.msra.mxu0 0.0
    %649 = vmatprep.subr.mxu0 0.0
    %650 = vmatpush2.msra.mxu0 0.0
    %651 = vmatprep.subr.mxu0 0.0
    %652 = vmatpush2.msra.mxu0 0.0
    %653 = vmatprep.subr.mxu0 0.0
    %654 = vmatpush2.msra.mxu0 0.0
    %655 = vmatprep.subr.mxu0 0.0
    %656 = vmatpush2.msra.mxu0 0.0
    %657 = vmatprep.subr.mxu0 0.0
    %658 = vmatpush2.msra.mxu0 0.0
    %659 = vmatprep.subr.mxu0 0.0
    %660 = vmatpush2.msra.mxu0 0.0
    %661 = vmatprep.subr.mxu0 0.0
    %662 = vmatpush2.msra.mxu0 0.0
    %663 = vmatprep.subr.mxu0 0.0
    %664 = vmatpush2.msra.mxu0 0.0
    %665 = vmatprep.mubr.f32.mxu0 0.0
    %666 = vmatmul.mubr.f32.gmra.mxu0 %v528
    %v667 = vpop.f32.mrf.mxu0
    %v668 = vadd.f32 %v524, %v667
    %v669 = vpop.f32.mrf.mxu0
    %v670 = vadd.f32 %v524, %v669
    %671 = vdwg.mxu0
    %v672 = vadd.f32 %v597, %v599
    %v673 = vadd.f32 %v672, %v668
    %v674 = vadd.f32 %v673, %v670
    %675 = vadd.xlane.f32.xlu0 %v674
    %v676 = vpop.xlane.xlu0 %675
    %v677 = vmul.f32 %v597, %v597
    %v678 = vmul.f32 %v599, %v599
    %v679 = vmul.f32 %v668, %v668
    %v680 = vmul.f32 %v670, %v670
    %v681 = vadd.f32 %v677, %v678
    %v682 = vadd.f32 %v681, %v679
    %v683 = vadd.f32 %v682, %v680
    %684 = vadd.xlane.f32.xlu0 %v683
    %v685 = vpop.xlane.xlu0 %684
    %v686 = vmul.f32 %v676, 0.001953125
    %v687 = vmul.f32 %v685, 0.001953125
    %v688 = vmul.f32 %v686, %v686
    %v689 = vsub.f32 %v687, %v688
    %v690 = vmax.f32 %v689, 0.0
    %v691 = vsub.f32 %v597, %v686
    %v692 = vsub.f32 %v599, %v686
    %v693 = vsub.f32 %v668, %v686
    %v694 = vsub.f32 %v670, %v686
    %v695 = vadd.f32 %v690, 1e-05
    %v696 = vrsqrt.pop %v695
    %v697 = vmul.f32 %v696, %v519
    %699 = vset.pattern.permute.xlu0 1
    %700 = vperm.xlu0 %699, %v697
    %v701 = vpop.permute.xlu0 %700
    %v703 = vmul.f32 %v691, %v701
    %v704 = vmul.f32 %v692, %v701
    %v705 = vmul.f32 %v693, %v701
    %v706 = vmul.f32 %v694, %v701
    %707 = vset.pattern.permute.xlu0 2
    %708 = vperm.xlu0 %707, %v519
    %v709 = vpop.permute.xlu0 %708
    %v711 = vadd.f32 %v703, %v709
    %v712 = vadd.f32 %v704, %v709
    %v713 = vadd.f32 %v705, %v709
    %v714 = vadd.f32 %v706, %v709
    %vm715 = vcmp.ge.f32.partialorder %v711, 0.0
    %vm716 = vcmp.ge.f32.partialorder %v712, 0.0
    %vm717 = vcmp.ge.f32.partialorder %v713, 0.0
    %vm718 = vcmp.ge.f32.partialorder %v714, 0.0
    %v719 = vmul.f32 %v711, 0.2
    %v720 = vmul.f32 %v712, 0.2
    %v721 = vmul.f32 %v713, 0.2
    %v722 = vmul.f32 %v714, 0.2
    %v723 = vsel %vm715, %v711, %v719
    %v724 = vsel %vm716, %v712, %v720
    %v725 = vsel %vm717, %v713, %v721
    %v726 = vsel %vm718, %v714, %v722
    %727 = vrot.lane.b32.xlu0 %v723, 17
    %v728 = vpop.permute.xlu0 %727
    %729 = vrot.lane.b32.xlu0 %v724, 17
    %v730 = vpop.permute.xlu0 %729
    %731 = vrot.lane.b32.xlu0 %v725, 17
    %v732 = vpop.permute.xlu0 %731
    %733 = vrot.lane.b32.xlu0 %v726, 17
    %v734 = vpop.permute.xlu0 %733
    %v735 = vsel %vm199, %v732, %v734
    %v736 = vsel %vm199, %v730, %v732
    %v737 = vsel %vm199, %v728, %v730
    %v738 = vsel %vm199, %v734, %v728
    %v739 = vmul.f32 %v738, %v213
    %v740 = vmul.f32 %v737, %v217
    %v741 = vmul.f32 %v736, %v221
    %v742 = vmul.f32 %v735, %v225
    %743 = vrot.lane.b32.xlu0 %v723, 16
    %v744 = vpop.permute.xlu0 %743
    %745 = vrot.lane.b32.xlu0 %v724, 16
    %v746 = vpop.permute.xlu0 %745
    %747 = vrot.lane.b32.xlu0 %v725, 16
    %v748 = vpop.permute.xlu0 %747
    %749 = vrot.lane.b32.xlu0 %v726, 16
    %v750 = vpop.permute.xlu0 %749
    %v751 = vsel %vm242, %v748, %v750
    %v752 = vsel %vm242, %v746, %v748
    %v753 = vsel %vm242, %v744, %v746
    %v754 = vsel %vm242, %v750, %v744
    %v755 = vmul.f32 %v754, %v253
    %v756 = vmul.f32 %v753, %v257
    %v757 = vmul.f32 %v752, %v261
    %v758 = vmul.f32 %v751, %v265
    %759 = vrot.lane.b32.xlu0 %v723, 15
    %v760 = vpop.permute.xlu0 %759
    %761 = vrot.lane.b32.xlu0 %v724, 15
    %v762 = vpop.permute.xlu0 %761
    %763 = vrot.lane.b32.xlu0 %v725, 15
    %v764 = vpop.permute.xlu0 %763
    %765 = vrot.lane.b32.xlu0 %v726, 15
    %v766 = vpop.permute.xlu0 %765
    %v767 = vsel %vm282, %v764, %v766
    %v768 = vsel %vm282, %v762, %v764
    %v769 = vsel %vm282, %v760, %v762
    %v770 = vsel %vm282, %v766, %v760
    %v771 = vmul.f32 %v770, %v295
    %v772 = vmul.f32 %v769, %v299
    %v773 = vmul.f32 %v768, %v303
    %v774 = vmul.f32 %v767, %v307
    %775 = vrot.lane.b32.xlu0 %v723, 1
    %v776 = vpop.permute.xlu0 %775
    %777 = vrot.lane.b32.xlu0 %v724, 1
    %v778 = vpop.permute.xlu0 %777
    %779 = vrot.lane.b32.xlu0 %v725, 1
    %v780 = vpop.permute.xlu0 %779
    %781 = vrot.lane.b32.xlu0 %v726, 1
    %v782 = vpop.permute.xlu0 %781
    %v783 = vsel %vm324, %v780, %v782
    %v784 = vsel %vm324, %v778, %v780
    %v785 = vsel %vm324, %v776, %v778
    %v786 = vsel %vm324, %v782, %v776
    %v787 = vmul.f32 %v786, %v335
    %v788 = vmul.f32 %v785, %v339
    %v789 = vmul.f32 %v784, %v343
    %v790 = vmul.f32 %v783, %v347
    %791 = vrot.lane.b32.xlu0 %v723, 127
    %v792 = vpop.permute.xlu0 %791
    %793 = vrot.lane.b32.xlu0 %v724, 127
    %v794 = vpop.permute.xlu0 %793
    %795 = vrot.lane.b32.xlu0 %v725, 127
    %v796 = vpop.permute.xlu0 %795
    %797 = vrot.lane.b32.xlu0 %v726, 127
    %v798 = vpop.permute.xlu0 %797
    %v799 = vsel %vm364, %v796, %v798
    %v800 = vsel %vm364, %v794, %v796
    %v801 = vsel %vm364, %v792, %v794
    %v802 = vsel %vm364, %v798, %v792
    %v803 = vmul.f32 %v801, %v375
    %v804 = vmul.f32 %v800, %v379
    %v805 = vmul.f32 %v799, %v383
    %v806 = vmul.f32 %v802, %v387
    %807 = vrot.lane.b32.xlu0 %v723, 113
    %v808 = vpop.permute.xlu0 %807
    %809 = vrot.lane.b32.xlu0 %v724, 113
    %v810 = vpop.permute.xlu0 %809
    %811 = vrot.lane.b32.xlu0 %v725, 113
    %v812 = vpop.permute.xlu0 %811
    %813 = vrot.lane.b32.xlu0 %v726, 113
    %v814 = vpop.permute.xlu0 %813
    %v815 = vsel %vm404, %v812, %v814
    %v816 = vsel %vm404, %v810, %v812
    %v817 = vsel %vm404, %v808, %v810
    %v818 = vsel %vm404, %v814, %v808
    %v819 = vmul.f32 %v817, %v417
    %v820 = vmul.f32 %v816, %v421
    %v821 = vmul.f32 %v815, %v425
    %v822 = vmul.f32 %v818, %v429
    %823 = vrot.lane.b32.xlu0 %v723, 112
    %v824 = vpop.permute.xlu0 %823
    %825 = vrot.lane.b32.xlu0 %v724, 112
    %v826 = vpop.permute.xlu0 %825
    %827 = vrot.lane.b32.xlu0 %v725, 112
    %v828 = vpop.permute.xlu0 %827
    %829 = vrot.lane.b32.xlu0 %v726, 112
    %v830 = vpop.permute.xlu0 %829
    %v831 = vsel %vm446, %v828, %v830
    %v832 = vsel %vm446, %v826, %v828
    %v833 = vsel %vm446, %v824, %v826
    %v834 = vsel %vm446, %v830, %v824
    %v835 = vmul.f32 %v833, %v457
    %v836 = vmul.f32 %v832, %v461
    %v837 = vmul.f32 %v831, %v465
    %v838 = vmul.f32 %v834, %v469
    %839 = vrot.lane.b32.xlu0 %v723, 111
    %v840 = vpop.permute.xlu0 %839
    %841 = vrot.lane.b32.xlu0 %v724, 111
    %v842 = vpop.permute.xlu0 %841
    %843 = vrot.lane.b32.xlu0 %v725, 111
    %v844 = vpop.permute.xlu0 %843
    %845 = vrot.lane.b32.xlu0 %v726, 111
    %v846 = vpop.permute.xlu0 %845
    %v847 = vsel %vm486, %v844, %v846
    %v848 = vsel %vm486, %v842, %v844
    %v849 = vsel %vm486, %v840, %v842
    %v850 = vsel %vm486, %v846, %v840
    %v851 = vmul.f32 %v849, %v498
    %v852 = vmul.f32 %v848, %v502
    %v853 = vmul.f32 %v847, %v506
    %v854 = vmul.f32 %v850, %v510
    %v855 = vld [vmem:[%s1 + $0x28] sm:$0xff]
    %v856 = vld [vmem:[%s1 + $0x20] sm:$0xff]
    %858 = vset.pattern.permute.xlu0 0
    %859 = vperm.xlu0 %858, %v855
    %v860 = vpop.permute.xlu0 %859
    %v863 = vsel %vm526, %v856, 0
    %865 = vmatprep.subr.mxu0 0.0
    %866 = vmatpush1.msra.mxu0 0.0
    %867 = vmatprep.subr.mxu0 0.0
    %868 = vmatpush1.msra.mxu0 0.0
    %869 = vmatprep.subr.mxu0 0.0
    %870 = vmatpush1.msra.mxu0 0.0
    %871 = vmatprep.subr.mxu0 0.0
    %872 = vmatpush1.msra.mxu0 0.0
    %873 = vmatprep.subr.mxu0 0.0
    %874 = vmatpush1.msra.mxu0 0.0
    %875 = vmatprep.subr.mxu0 0.0
    %876 = vmatpush1.msra.mxu0 0.0
    %877 = vmatprep.subr.mxu0 0.0
    %878 = vmatpush1.msra.mxu0 0.0
    %879 = vmatprep.subr.mxu0 %v852
    %880 = vmatpush1.msra.mxu0 %v851
    %881 = vmatprep.subr.mxu0 %v836
    %882 = vmatpush1.msra.mxu0 %v835
    %883 = vmatprep.subr.mxu0 %v820
    %884 = vmatpush1.msra.mxu0 %v819
    %885 = vmatprep.subr.mxu0 %v804
    %886 = vmatpush1.msra.mxu0 %v803
    %887 = vmatprep.subr.mxu0 %v724
    %888 = vmatpush1.msra.mxu0 %v723
    %889 = vmatprep.subr.mxu0 %v788
    %890 = vmatpush1.msra.mxu0 %v787
    %891 = vmatprep.subr.mxu0 %v772
    %892 = vmatpush1.msra.mxu0 %v771
    %893 = vmatprep.subr.mxu0 %v756
    %894 = vmatpush1.msra.mxu0 %v755
    %895 = vmatprep.subr.mxu0 %v740
    %896 = vmatpush1.msra.mxu0 %v739
    %897 = vmatprep.subr.mxu0 0.0
    %898 = vmatpush2.msra.mxu0 0.0
    %899 = vmatprep.subr.mxu0 0.0
    %900 = vmatpush2.msra.mxu0 0.0
    %901 = vmatprep.subr.mxu0 0.0
    %902 = vmatpush2.msra.mxu0 0.0
    %903 = vmatprep.subr.mxu0 0.0
    %904 = vmatpush2.msra.mxu0 0.0
    %905 = vmatprep.subr.mxu0 0.0
    %906 = vmatpush2.msra.mxu0 0.0
    %907 = vmatprep.subr.mxu0 0.0
    %908 = vmatpush2.msra.mxu0 0.0
    %909 = vmatprep.subr.mxu0 0.0
    %910 = vmatpush2.msra.mxu0 0.0
    %911 = vmatprep.subr.mxu0 0.0
    %912 = vmatpush2.msra.mxu0 0.0
    %913 = vmatprep.subr.mxu0 0.0
    %914 = vmatpush2.msra.mxu0 0.0
    %915 = vmatprep.subr.mxu0 0.0
    %916 = vmatpush2.msra.mxu0 0.0
    %917 = vmatprep.subr.mxu0 0.0
    %918 = vmatpush2.msra.mxu0 0.0
    %919 = vmatprep.subr.mxu0 0.0
    %920 = vmatpush2.msra.mxu0 0.0
    %921 = vmatprep.subr.mxu0 0.0
    %922 = vmatpush2.msra.mxu0 0.0
    %923 = vmatprep.subr.mxu0 0.0
    %924 = vmatpush2.msra.mxu0 0.0
    %925 = vmatprep.subr.mxu0 0.0
    %926 = vmatpush2.msra.mxu0 0.0
    %927 = vmatprep.subr.mxu0 0.0
    %928 = vmatpush2.msra.mxu0 0.0
    %929 = vmatprep.mubr.f32.mxu0 0.0
    %930 = vmatmul.mubr.f32.gmra.mxu0 %v863
    %v931 = vpop.f32.mrf.mxu0
    %v932 = vadd.f32 %v860, %v931
    %v933 = vpop.f32.mrf.mxu0
    %v934 = vadd.f32 %v860, %v933
    %935 = vdwg.mxu0
    %936 = vmatprep.subr.mxu0 0.0
    %937 = vmatpush1.msra.mxu0 0.0
    %938 = vmatprep.subr.mxu0 0.0
    %939 = vmatpush1.msra.mxu0 0.0
    %940 = vmatprep.subr.mxu0 0.0
    %941 = vmatpush1.msra.mxu0 0.0
    %942 = vmatprep.subr.mxu0 0.0
    %943 = vmatpush1.msra.mxu0 0.0
    %944 = vmatprep.subr.mxu0 0.0
    %945 = vmatpush1.msra.mxu0 0.0
    %946 = vmatprep.subr.mxu0 0.0
    %947 = vmatpush1.msra.mxu0 0.0
    %948 = vmatprep.subr.mxu0 0.0
    %949 = vmatpush1.msra.mxu0 0.0
    %950 = vmatprep.subr.mxu0 %v854
    %951 = vmatpush1.msra.mxu0 %v853
    %952 = vmatprep.subr.mxu0 %v838
    %953 = vmatpush1.msra.mxu0 %v837
    %954 = vmatprep.subr.mxu0 %v822
    %955 = vmatpush1.msra.mxu0 %v821
    %956 = vmatprep.subr.mxu0 %v806
    %957 = vmatpush1.msra.mxu0 %v805
    %958 = vmatprep.subr.mxu0 %v726
    %959 = vmatpush1.msra.mxu0 %v725
    %960 = vmatprep.subr.mxu0 %v790
    %961 = vmatpush1.msra.mxu0 %v789
    %962 = vmatprep.subr.mxu0 %v774
    %963 = vmatpush1.msra.mxu0 %v773
    %964 = vmatprep.subr.mxu0 %v758
    %965 = vmatpush1.msra.mxu0 %v757
    %966 = vmatprep.subr.mxu0 %v742
    %967 = vmatpush1.msra.mxu0 %v741
    %968 = vmatprep.subr.mxu0 0.0
    %969 = vmatpush2.msra.mxu0 0.0
    %970 = vmatprep.subr.mxu0 0.0
    %971 = vmatpush2.msra.mxu0 0.0
    %972 = vmatprep.subr.mxu0 0.0
    %973 = vmatpush2.msra.mxu0 0.0
    %974 = vmatprep.subr.mxu0 0.0
    %975 = vmatpush2.msra.mxu0 0.0
    %976 = vmatprep.subr.mxu0 0.0
    %977 = vmatpush2.msra.mxu0 0.0
    %978 = vmatprep.subr.mxu0 0.0
    %979 = vmatpush2.msra.mxu0 0.0
    %980 = vmatprep.subr.mxu0 0.0
    %981 = vmatpush2.msra.mxu0 0.0
    %982 = vmatprep.subr.mxu0 0.0
    %983 = vmatpush2.msra.mxu0 0.0
    %984 = vmatprep.subr.mxu0 0.0
    %985 = vmatpush2.msra.mxu0 0.0
    %986 = vmatprep.subr.mxu0 0.0
    %987 = vmatpush2.msra.mxu0 0.0
    %988 = vmatprep.subr.mxu0 0.0
    %989 = vmatpush2.msra.mxu0 0.0
    %990 = vmatprep.subr.mxu0 0.0
    %991 = vmatpush2.msra.mxu0 0.0
    %992 = vmatprep.subr.mxu0 0.0
    %993 = vmatpush2.msra.mxu0 0.0
    %994 = vmatprep.subr.mxu0 0.0
    %995 = vmatpush2.msra.mxu0 0.0
    %996 = vmatprep.subr.mxu0 0.0
    %997 = vmatpush2.msra.mxu0 0.0
    %998 = vmatprep.subr.mxu0 0.0
    %999 = vmatpush2.msra.mxu0 0.0
    %1000 = vmatprep.mubr.f32.mxu0 0.0
    %1001 = vmatmul.mubr.f32.gmra.mxu0 %v863
    %v1002 = vpop.f32.mrf.mxu0
    %v1003 = vadd.f32 %v860, %v1002
    %v1004 = vpop.f32.mrf.mxu0
    %v1005 = vadd.f32 %v860, %v1004
    %1006 = vdwg.mxu0
    %v1007 = vadd.f32 %v932, %v934
    %v1008 = vadd.f32 %v1007, %v1003
    %v1009 = vadd.f32 %v1008, %v1005
    %1010 = vadd.xlane.f32.xlu0 %v1009
    %v1011 = vpop.xlane.xlu0 %1010
    %v1012 = vmul.f32 %v932, %v932
    %v1013 = vmul.f32 %v934, %v934
    %v1014 = vmul.f32 %v1003, %v1003
    %v1015 = vmul.f32 %v1005, %v1005
    %v1016 = vadd.f32 %v1012, %v1013
    %v1017 = vadd.f32 %v1016, %v1014
    %v1018 = vadd.f32 %v1017, %v1015
    %1019 = vadd.xlane.f32.xlu0 %v1018
    %v1020 = vpop.xlane.xlu0 %1019
    %v1021 = vmul.f32 %v1011, 0.001953125
    %v1022 = vmul.f32 %v1020, 0.001953125
    %v1023 = vmul.f32 %v1021, %v1021
    %v1024 = vsub.f32 %v1022, %v1023
    %v1025 = vmax.f32 %v1024, 0.0
    %v1026 = vsub.f32 %v932, %v1021
    %v1027 = vsub.f32 %v934, %v1021
    %v1028 = vsub.f32 %v1003, %v1021
    %v1029 = vsub.f32 %v1005, %v1021
    %v1030 = vadd.f32 %v1025, 1e-05
    %v1031 = vrsqrt.pop %v1030
    %v1032 = vmul.f32 %v1031, %v855
    %1034 = vset.pattern.permute.xlu0 1
    %1035 = vperm.xlu0 %1034, %v1032
    %v1036 = vpop.permute.xlu0 %1035
    %v1038 = vmul.f32 %v1026, %v1036
    %v1039 = vmul.f32 %v1027, %v1036
    %v1040 = vmul.f32 %v1028, %v1036
    %v1041 = vmul.f32 %v1029, %v1036
    %1042 = vset.pattern.permute.xlu0 2
    %1043 = vperm.xlu0 %1042, %v855
    %v1044 = vpop.permute.xlu0 %1043
    %v1046 = vadd.f32 %v1038, %v1044
    %v1047 = vadd.f32 %v1039, %v1044
    %v1048 = vadd.f32 %v1040, %v1044
    %v1049 = vadd.f32 %v1041, %v1044
    %vm1050 = vcmp.ge.f32.partialorder %v1046, 0.0
    %vm1051 = vcmp.ge.f32.partialorder %v1047, 0.0
    %vm1052 = vcmp.ge.f32.partialorder %v1048, 0.0
    %vm1053 = vcmp.ge.f32.partialorder %v1049, 0.0
    %v1054 = vmul.f32 %v1046, 0.2
    %v1055 = vmul.f32 %v1047, 0.2
    %v1056 = vmul.f32 %v1048, 0.2
    %v1057 = vmul.f32 %v1049, 0.2
    %v1058 = vsel %vm1050, %v1046, %v1054
    %v1059 = vsel %vm1051, %v1047, %v1055
    %v1060 = vsel %vm1052, %v1048, %v1056
    %v1061 = vsel %vm1053, %v1049, %v1057
    %v1062 = vld [vmem:[%s3] sm:$0xf]
    %v1063 = vld [vmem:[%s3 + $0x4] sm:$0xf]
    %v1064 = vld [vmem:[%s3 + $0x8] sm:$0xf]
    %v1065 = vld [vmem:[%s3 + $0xc] sm:$0xf]
    %v1066 = vld [vmem:[%s3 + $0x10] sm:$0xf]
    %v1067 = vld [vmem:[%s3 + $0x14] sm:$0xf]
    %v1068 = vld [vmem:[%s3 + $0x18] sm:$0xf]
    %v1069 = vld [vmem:[%s3 + $0x1c] sm:$0xf]
    %v1070 = vld [vmem:[%s3 + $0x20] sm:$0xf]
    %v1071 = vld [vmem:[%s3 + $0x24] sm:$0xf]
    %v1072 = vld [vmem:[%s3 + $0x28] sm:$0xf]
    %v1073 = vld [vmem:[%s3 + $0x2c] sm:$0xf]
    %v1074 = vld [vmem:[%s3 + $0x30] sm:$0xf]
    %v1075 = vld [vmem:[%s3 + $0x34] sm:$0xf]
    %v1076 = vld [vmem:[%s3 + $0x38] sm:$0xf]
    %v1077 = vld [vmem:[%s3 + $0x3c] sm:$0xf]
    %v1078 = vld [vmem:[%s3 + $0x40] sm:$0xf]
    %v1079 = vld [vmem:[%s3 + $0x44] sm:$0xf]
    %v1080 = vld [vmem:[%s3 + $0x48] sm:$0xf]
    %v1081 = vld [vmem:[%s3 + $0x4c] sm:$0xf]
    %v1082 = vld [vmem:[%s3 + $0x50] sm:$0xf]
    %v1083 = vld [vmem:[%s3 + $0x54] sm:$0xf]
    %v1084 = vld [vmem:[%s3 + $0x58] sm:$0xf]
    %v1085 = vld [vmem:[%s3 + $0x5c] sm:$0xf]
    %v1086 = vld [vmem:[%s3 + $0x60] sm:$0xf]
    %v1087 = vld [vmem:[%s3 + $0x64] sm:$0xf]
    %v1088 = vld [vmem:[%s3 + $0x68] sm:$0xf]
    %v1089 = vld [vmem:[%s3 + $0x6c] sm:$0xf]
    %v1090 = vld [vmem:[%s3 + $0x70] sm:$0xf]
    %v1091 = vld [vmem:[%s3 + $0x74] sm:$0xf]
    %v1092 = vld [vmem:[%s3 + $0x78] sm:$0xf]
    %v1093 = vld [vmem:[%s3 + $0x7c] sm:$0xf]
    %v1094 = vld [vmem:[%s3 + $0x80] sm:$0xf]
    %v1095 = vld [vmem:[%s3 + $0x84] sm:$0xf]
    %v1096 = vld [vmem:[%s3 + $0x88] sm:$0xf]
    %v1097 = vld [vmem:[%s3 + $0x8c] sm:$0xf]
    %v1098 = vld [vmem:[%s3 + $0x90] sm:$0xf]
    %v1099 = vld [vmem:[%s3 + $0x94] sm:$0xf]
    %v1100 = vld [vmem:[%s3 + $0x98] sm:$0xf]
    %v1101 = vld [vmem:[%s3 + $0x9c] sm:$0xf]
    %v1102 = vld [vmem:[%s3 + $0xa0] sm:$0xf]
    %v1103 = vld [vmem:[%s3 + $0xa4] sm:$0xf]
    %v1104 = vld [vmem:[%s3 + $0xa8] sm:$0xf]
    %v1105 = vld [vmem:[%s3 + $0xac] sm:$0xf]
    %v1106 = vld [vmem:[%s3 + $0xb0] sm:$0xf]
    %v1107 = vld [vmem:[%s3 + $0xb4] sm:$0xf]
    %v1108 = vld [vmem:[%s3 + $0xb8] sm:$0xf]
    %v1109 = vld [vmem:[%s3 + $0xbc] sm:$0xf]
    %v1110 = vld [vmem:[%s3 + $0xc0] sm:$0xf]
    %v1111 = vld [vmem:[%s3 + $0xc4] sm:$0xf]
    %v1112 = vld [vmem:[%s3 + $0xc8] sm:$0xf]
    %v1113 = vld [vmem:[%s3 + $0xcc] sm:$0xf]
    %v1114 = vld [vmem:[%s3 + $0xd0] sm:$0xf]
    %v1115 = vld [vmem:[%s3 + $0xd4] sm:$0xf]
    %v1116 = vld [vmem:[%s3 + $0xd8] sm:$0xf]
    %v1117 = vld [vmem:[%s3 + $0xdc] sm:$0xf]
    %v1118 = vld [vmem:[%s3 + $0xe0] sm:$0xf]
    %v1119 = vld [vmem:[%s3 + $0xe4] sm:$0xf]
    %v1120 = vld [vmem:[%s3 + $0xe8] sm:$0xf]
    %v1121 = vld [vmem:[%s3 + $0xec] sm:$0xf]
    %v1122 = vld [vmem:[%s3 + $0xf0] sm:$0xf]
    %v1123 = vld [vmem:[%s3 + $0xf4] sm:$0xf]
    %v1124 = vld [vmem:[%s3 + $0xf8] sm:$0xf]
    %v1125 = vld [vmem:[%s3 + $0xfc] sm:$0xf]
    %v1126 = vunpack.c.l.bf16 %v1062
    %v1127 = vunpack.c.l.bf16 %v1063
    %v1128 = vunpack.c.l.bf16 %v1064
    %v1129 = vunpack.c.l.bf16 %v1065
    %v1130 = vunpack.c.l.bf16 %v1066
    %v1131 = vunpack.c.l.bf16 %v1067
    %v1132 = vunpack.c.l.bf16 %v1068
    %v1133 = vunpack.c.l.bf16 %v1069
    %v1134 = vunpack.c.l.bf16 %v1070
    %v1135 = vunpack.c.l.bf16 %v1071
    %v1136 = vunpack.c.l.bf16 %v1072
    %v1137 = vunpack.c.l.bf16 %v1073
    %v1138 = vunpack.c.l.bf16 %v1074
    %v1139 = vunpack.c.l.bf16 %v1075
    %v1140 = vunpack.c.l.bf16 %v1076
    %v1141 = vunpack.c.l.bf16 %v1077
    %v1142 = vunpack.c.l.bf16 %v1078
    %v1143 = vunpack.c.l.bf16 %v1079
    %v1144 = vunpack.c.l.bf16 %v1080
    %v1145 = vunpack.c.l.bf16 %v1081
    %v1146 = vunpack.c.l.bf16 %v1082
    %v1147 = vunpack.c.l.bf16 %v1083
    %v1148 = vunpack.c.l.bf16 %v1084
    %v1149 = vunpack.c.l.bf16 %v1085
    %v1150 = vunpack.c.l.bf16 %v1086
    %v1151 = vunpack.c.l.bf16 %v1087
    %v1152 = vunpack.c.l.bf16 %v1088
    %v1153 = vunpack.c.l.bf16 %v1089
    %v1154 = vunpack.c.l.bf16 %v1090
    %v1155 = vunpack.c.l.bf16 %v1091
    %v1156 = vunpack.c.l.bf16 %v1092
    %v1157 = vunpack.c.l.bf16 %v1093
    %v1158 = vunpack.c.l.bf16 %v1094
    %v1159 = vunpack.c.l.bf16 %v1095
    %v1160 = vunpack.c.l.bf16 %v1096
    %v1161 = vunpack.c.l.bf16 %v1097
    %v1162 = vunpack.c.l.bf16 %v1098
    %v1163 = vunpack.c.l.bf16 %v1099
    %v1164 = vunpack.c.l.bf16 %v1100
    %v1165 = vunpack.c.l.bf16 %v1101
    %v1166 = vunpack.c.l.bf16 %v1102
    %v1167 = vunpack.c.l.bf16 %v1103
    %v1168 = vunpack.c.l.bf16 %v1104
    %v1169 = vunpack.c.l.bf16 %v1105
    %v1170 = vunpack.c.l.bf16 %v1106
    %v1171 = vunpack.c.l.bf16 %v1107
    %v1172 = vunpack.c.l.bf16 %v1108
    %v1173 = vunpack.c.l.bf16 %v1109
    %v1174 = vunpack.c.l.bf16 %v1110
    %v1175 = vunpack.c.l.bf16 %v1111
    %v1176 = vunpack.c.l.bf16 %v1112
    %v1177 = vunpack.c.l.bf16 %v1113
    %v1178 = vunpack.c.l.bf16 %v1114
    %v1179 = vunpack.c.l.bf16 %v1115
    %v1180 = vunpack.c.l.bf16 %v1116
    %v1181 = vunpack.c.l.bf16 %v1117
    %v1182 = vunpack.c.l.bf16 %v1118
    %v1183 = vunpack.c.l.bf16 %v1119
    %v1184 = vunpack.c.l.bf16 %v1120
    %v1185 = vunpack.c.l.bf16 %v1121
    %v1186 = vunpack.c.l.bf16 %v1122
    %v1187 = vunpack.c.l.bf16 %v1123
    %v1188 = vunpack.c.l.bf16 %v1124
    %v1189 = vunpack.c.l.bf16 %v1125
    %1190 = vmatprep.subr.mxu0 0.0
    %1191 = vmatpush1.msra.mxu0 %v1141
    %1192 = vmatprep.subr.mxu0 0.0
    %1193 = vmatpush1.msra.mxu0 %v1140
    %1194 = vmatprep.subr.mxu0 0.0
    %1195 = vmatpush1.msra.mxu0 %v1139
    %1196 = vmatprep.subr.mxu0 0.0
    %1197 = vmatpush1.msra.mxu0 %v1138
    %1198 = vmatprep.subr.mxu0 0.0
    %1199 = vmatpush1.msra.mxu0 %v1137
    %1200 = vmatprep.subr.mxu0 0.0
    %1201 = vmatpush1.msra.mxu0 %v1136
    %1202 = vmatprep.subr.mxu0 0.0
    %1203 = vmatpush1.msra.mxu0 %v1135
    %1204 = vmatprep.subr.mxu0 0.0
    %1205 = vmatpush1.msra.mxu0 %v1134
    %1206 = vmatprep.subr.mxu0 0.0
    %1207 = vmatpush1.msra.mxu0 %v1133
    %1208 = vmatprep.subr.mxu0 0.0
    %1209 = vmatpush1.msra.mxu0 %v1132
    %1210 = vmatprep.subr.mxu0 0.0
    %1211 = vmatpush1.msra.mxu0 %v1131
    %1212 = vmatprep.subr.mxu0 0.0
    %1213 = vmatpush1.msra.mxu0 %v1130
    %1214 = vmatprep.subr.mxu0 0.0
    %1215 = vmatpush1.msra.mxu0 %v1129
    %1216 = vmatprep.subr.mxu0 0.0
    %1217 = vmatpush1.msra.mxu0 %v1128
    %1218 = vmatprep.subr.mxu0 0.0
    %1219 = vmatpush1.msra.mxu0 %v1127
    %1220 = vmatprep.subr.mxu0 0.0
    %1221 = vmatpush1.msra.mxu0 %v1126
    %1222 = vmatprep.subr.mxu0 0.0
    %1223 = vmatpush2.msra.mxu0 %v1157
    %1224 = vmatprep.subr.mxu0 0.0
    %1225 = vmatpush2.msra.mxu0 %v1156
    %1226 = vmatprep.subr.mxu0 0.0
    %1227 = vmatpush2.msra.mxu0 %v1155
    %1228 = vmatprep.subr.mxu0 0.0
    %1229 = vmatpush2.msra.mxu0 %v1154
    %1230 = vmatprep.subr.mxu0 0.0
    %1231 = vmatpush2.msra.mxu0 %v1153
    %1232 = vmatprep.subr.mxu0 0.0
    %1233 = vmatpush2.msra.mxu0 %v1152
    %1234 = vmatprep.subr.mxu0 0.0
    %1235 = vmatpush2.msra.mxu0 %v1151
    %1236 = vmatprep.subr.mxu0 0.0
    %1237 = vmatpush2.msra.mxu0 %v1150
    %1238 = vmatprep.subr.mxu0 0.0
    %1239 = vmatpush2.msra.mxu0 %v1149
    %1240 = vmatprep.subr.mxu0 0.0
    %1241 = vmatpush2.msra.mxu0 %v1148
    %1242 = vmatprep.subr.mxu0 0.0
    %1243 = vmatpush2.msra.mxu0 %v1147
    %1244 = vmatprep.subr.mxu0 0.0
    %1245 = vmatpush2.msra.mxu0 %v1146
    %1246 = vmatprep.subr.mxu0 0.0
    %1247 = vmatpush2.msra.mxu0 %v1145
    %1248 = vmatprep.subr.mxu0 0.0
    %1249 = vmatpush2.msra.mxu0 %v1144
    %1250 = vmatprep.subr.mxu0 0.0
    %1251 = vmatpush2.msra.mxu0 %v1143
    %1252 = vmatprep.subr.mxu0 0.0
    %1253 = vmatpush2.msra.mxu0 %v1142
    %1254 = vmatprep.mubr.f32.mxu0 %v1059
    %1255 = vmatmul.mubr.f32.gmra.mxu0 %v1058
    %v1256 = vpop.f32.mrf.mxu0
    %v1257 = vadd.f32 0.0, %v1256
    %v1258 = vpop.f32.mrf.mxu0
    %1259 = vdwg.mxu0
    %1260 = vmatprep.subr.mxu0 0.0
    %1261 = vmatpush1.msra.mxu0 %v1173
    %1262 = vmatprep.subr.mxu0 0.0
    %1263 = vmatpush1.msra.mxu0 %v1172
    %1264 = vmatprep.subr.mxu0 0.0
    %1265 = vmatpush1.msra.mxu0 %v1171
    %1266 = vmatprep.subr.mxu0 0.0
    %1267 = vmatpush1.msra.mxu0 %v1170
    %1268 = vmatprep.subr.mxu0 0.0
    %1269 = vmatpush1.msra.mxu0 %v1169
    %1270 = vmatprep.subr.mxu0 0.0
    %1271 = vmatpush1.msra.mxu0 %v1168
    %1272 = vmatprep.subr.mxu0 0.0
    %1273 = vmatpush1.msra.mxu0 %v1167
    %1274 = vmatprep.subr.mxu0 0.0
    %1275 = vmatpush1.msra.mxu0 %v1166
    %1276 = vmatprep.subr.mxu0 0.0
    %1277 = vmatpush1.msra.mxu0 %v1165
    %1278 = vmatprep.subr.mxu0 0.0
    %1279 = vmatpush1.msra.mxu0 %v1164
    %1280 = vmatprep.subr.mxu0 0.0
    %1281 = vmatpush1.msra.mxu0 %v1163
    %1282 = vmatprep.subr.mxu0 0.0
    %1283 = vmatpush1.msra.mxu0 %v1162
    %1284 = vmatprep.subr.mxu0 0.0
    %1285 = vmatpush1.msra.mxu0 %v1161
    %1286 = vmatprep.subr.mxu0 0.0
    %1287 = vmatpush1.msra.mxu0 %v1160
    %1288 = vmatprep.subr.mxu0 0.0
    %1289 = vmatpush1.msra.mxu0 %v1159
    %1290 = vmatprep.subr.mxu0 0.0
    %1291 = vmatpush1.msra.mxu0 %v1158
    %1292 = vmatprep.subr.mxu0 0.0
    %1293 = vmatpush2.msra.mxu0 %v1189
    %1294 = vmatprep.subr.mxu0 0.0
    %1295 = vmatpush2.msra.mxu0 %v1188
    %1296 = vmatprep.subr.mxu0 0.0
    %1297 = vmatpush2.msra.mxu0 %v1187
    %1298 = vmatprep.subr.mxu0 0.0
    %1299 = vmatpush2.msra.mxu0 %v1186
    %1300 = vmatprep.subr.mxu0 0.0
    %1301 = vmatpush2.msra.mxu0 %v1185
    %1302 = vmatprep.subr.mxu0 0.0
    %1303 = vmatpush2.msra.mxu0 %v1184
    %1304 = vmatprep.subr.mxu0 0.0
    %1305 = vmatpush2.msra.mxu0 %v1183
    %1306 = vmatprep.subr.mxu0 0.0
    %1307 = vmatpush2.msra.mxu0 %v1182
    %1308 = vmatprep.subr.mxu0 0.0
    %1309 = vmatpush2.msra.mxu0 %v1181
    %1310 = vmatprep.subr.mxu0 0.0
    %1311 = vmatpush2.msra.mxu0 %v1180
    %1312 = vmatprep.subr.mxu0 0.0
    %1313 = vmatpush2.msra.mxu0 %v1179
    %1314 = vmatprep.subr.mxu0 0.0
    %1315 = vmatpush2.msra.mxu0 %v1178
    %1316 = vmatprep.subr.mxu0 0.0
    %1317 = vmatpush2.msra.mxu0 %v1177
    %1318 = vmatprep.subr.mxu0 0.0
    %1319 = vmatpush2.msra.mxu0 %v1176
    %1320 = vmatprep.subr.mxu0 0.0
    %1321 = vmatpush2.msra.mxu0 %v1175
    %1322 = vmatprep.subr.mxu0 0.0
    %1323 = vmatpush2.msra.mxu0 %v1174
    %1324 = vmatprep.mubr.f32.mxu0 %v1061
    %1325 = vmatmul.mubr.f32.gmra.mxu0 %v1060
    %v1326 = vpop.f32.mrf.mxu0
    %v1327 = vadd.f32 %v1257, %v1326
    %v1328 = vpop.f32.mrf.mxu0
    %1329 = vdwg.mxu0
    %v1330 = vld [vmem:[%s2 + $0x20] ss:$0 sm:$0xff]
    %v1331 = vld [vmem:[%s2 + $0x21] ss:$0 sm:$0xff]
    %1332 = vrot.lane.b32.xlu0 %v1327, 9
    %v1333 = vpop.permute.xlu0 %1332
    %vm1334 = vcmp.ge.f32.partialorder %v1330, 1.0
    %vm1335 = vcmp.ge.f32.partialorder %v1331, 1.0
    %vm1336 = vmand %vm1334, %vm1335
    %v1337 = vsel %vm1336, 1, 0
    %v1338 = vcvt.s32.f32 %v1337
    %v1339 = vmul.f32 %v1333, %v1338
    %1340 = vrot.lane.b32.xlu0 %v1327, 8
    %v1341 = vpop.permute.xlu0 %1340
    %v1342 = vsel %vm1334, 1, 0
    %v1343 = vcvt.s32.f32 %v1342
    %v1344 = vmul.f32 %v1341, %v1343
    %1345 = vrot.lane.b32.xlu0 %v1327, 7
    %v1346 = vpop.permute.xlu0 %1345
    %vm1347 = vcmp.lt.f32.partialorder %v1331, 7.0
    %vm1348 = vmand %vm1334, %vm1347
    %v1349 = vsel %vm1348, 1, 0
    %v1350 = vcvt.s32.f32 %v1349
    %v1351 = vmul.f32 %v1346, %v1350
    %1352 = vrot.lane.b32.xlu0 %v1327, 1
    %v1353 = vpop.permute.xlu0 %1352
    %v1354 = vsel %vm1335, 1, 0
    %v1355 = vcvt.s32.f32 %v1354
    %v1356 = vmul.f32 %v1353, %v1355
    %1357 = vrot.lane.b32.xlu0 %v1327, 127
    %v1358 = vpop.permute.xlu0 %1357
    %v1359 = vsel %vm1347, 1, 0
    %v1360 = vcvt.s32.f32 %v1359
    %v1361 = vmul.f32 %v1358, %v1360
    %1362 = vrot.lane.b32.xlu0 %v1327, 121
    %v1363 = vpop.permute.xlu0 %1362
    %vm1364 = vcmp.lt.f32.partialorder %v1330, 7.0
    %vm1365 = vmand %vm1364, %vm1335
    %v1366 = vsel %vm1365, 1, 0
    %v1367 = vcvt.s32.f32 %v1366
    %v1368 = vmul.f32 %v1363, %v1367
    %1369 = vrot.lane.b32.xlu0 %v1327, 120
    %v1370 = vpop.permute.xlu0 %1369
    %v1371 = vsel %vm1364, 1, 0
    %v1372 = vcvt.s32.f32 %v1371
    %v1373 = vmul.f32 %v1370, %v1372
    %1374 = vrot.lane.b32.xlu0 %v1327, 119
    %v1375 = vpop.permute.xlu0 %1374
    %vm1376 = vmand %vm1364, %vm1347
    %v1377 = vsel %vm1376, 1, 0
    %v1378 = vcvt.s32.f32 %v1377
    %v1379 = vmul.f32 %v1375, %v1378
    %v1380 = vld [vmem:[%s1 + $0x38] sm:$0xff]
    %v1381 = vld [vmem:[%s1 + $0x30] sm:$0xff]
    %1383 = vset.pattern.permute.xlu0 0
    %1384 = vperm.xlu0 %1383, %v1380
    %v1385 = vpop.permute.xlu0 %1384
    %v1388 = vsel %vm526, %v1381, 0
    %1390 = vmatprep.subr.mxu0 0.0
    %1391 = vmatpush1.msra.mxu0 0.0
    %1392 = vmatprep.subr.mxu0 0.0
    %1393 = vmatpush1.msra.mxu0 0.0
    %1394 = vmatprep.subr.mxu0 0.0
    %1395 = vmatpush1.msra.mxu0 0.0
    %1396 = vmatprep.subr.mxu0 0.0
    %1397 = vmatpush1.msra.mxu0 0.0
    %1398 = vmatprep.subr.mxu0 0.0
    %1399 = vmatpush1.msra.mxu0 0.0
    %1400 = vmatprep.subr.mxu0 0.0
    %1401 = vmatpush1.msra.mxu0 0.0
    %1402 = vmatprep.subr.mxu0 0.0
    %1403 = vmatpush1.msra.mxu0 0.0
    %1404 = vmatprep.subr.mxu0 0.0
    %1405 = vmatpush1.msra.mxu0 %v1379
    %1406 = vmatprep.subr.mxu0 0.0
    %1407 = vmatpush1.msra.mxu0 %v1373
    %1408 = vmatprep.subr.mxu0 0.0
    %1409 = vmatpush1.msra.mxu0 %v1368
    %1410 = vmatprep.subr.mxu0 0.0
    %1411 = vmatpush1.msra.mxu0 %v1361
    %1412 = vmatprep.subr.mxu0 0.0
    %1413 = vmatpush1.msra.mxu0 %v1327
    %1414 = vmatprep.subr.mxu0 0.0
    %1415 = vmatpush1.msra.mxu0 %v1356
    %1416 = vmatprep.subr.mxu0 0.0
    %1417 = vmatpush1.msra.mxu0 %v1351
    %1418 = vmatprep.subr.mxu0 0.0
    %1419 = vmatpush1.msra.mxu0 %v1344
    %1420 = vmatprep.subr.mxu0 0.0
    %1421 = vmatpush1.msra.mxu0 %v1339
    %1422 = vmatprep.subr.mxu0 0.0
    %1423 = vmatpush2.msra.mxu0 0.0
    %1424 = vmatprep.subr.mxu0 0.0
    %1425 = vmatpush2.msra.mxu0 0.0
    %1426 = vmatprep.subr.mxu0 0.0
    %1427 = vmatpush2.msra.mxu0 0.0
    %1428 = vmatprep.subr.mxu0 0.0
    %1429 = vmatpush2.msra.mxu0 0.0
    %1430 = vmatprep.subr.mxu0 0.0
    %1431 = vmatpush2.msra.mxu0 0.0
    %1432 = vmatprep.subr.mxu0 0.0
    %1433 = vmatpush2.msra.mxu0 0.0
    %1434 = vmatprep.subr.mxu0 0.0
    %1435 = vmatpush2.msra.mxu0 0.0
    %1436 = vmatprep.subr.mxu0 0.0
    %1437 = vmatpush2.msra.mxu0 0.0
    %1438 = vmatprep.subr.mxu0 0.0
    %1439 = vmatpush2.msra.mxu0 0.0
    %1440 = vmatprep.subr.mxu0 0.0
    %1441 = vmatpush2.msra.mxu0 0.0
    %1442 = vmatprep.subr.mxu0 0.0
    %1443 = vmatpush2.msra.mxu0 0.0
    %1444 = vmatprep.subr.mxu0 0.0
    %1445 = vmatpush2.msra.mxu0 0.0
    %1446 = vmatprep.subr.mxu0 0.0
    %1447 = vmatpush2.msra.mxu0 0.0
    %1448 = vmatprep.subr.mxu0 0.0
    %1449 = vmatpush2.msra.mxu0 0.0
    %1450 = vmatprep.subr.mxu0 0.0
    %1451 = vmatpush2.msra.mxu0 0.0
    %1452 = vmatprep.subr.mxu0 0.0
    %1453 = vmatpush2.msra.mxu0 0.0
    %1454 = vmatprep.mubr.f32.mxu0 0.0
    %1455 = vmatmul.mubr.f32.gmra.mxu0 %v1388
    %v1456 = vpop.f32.mrf.mxu0
    %v1457 = vadd.f32 %v1385, %v1456
    %v1458 = vpop.f32.mrf.mxu0
    %1459 = vdwg.mxu0
    %1460 = vadd.xlane.f32.xlu0 %v1457
    %v1461 = vpop.xlane.xlu0 %1460
    %v1462 = vmul.f32 %v1457, %v1457
    %1463 = vadd.xlane.f32.xlu0 %v1462
    %v1464 = vpop.xlane.xlu0 %1463
    %v1465 = vmul.f32 %v1461, 0.0078125
    %v1466 = vmul.f32 %v1464, 0.0078125
    %v1467 = vmul.f32 %v1465, %v1465
    %v1468 = vsub.f32 %v1466, %v1467
    %v1469 = vmax.f32 %v1468, 0.0
    %v1470 = vsub.f32 %v1457, %v1465
    %v1471 = vadd.f32 %v1469, 1e-05
    %v1472 = vrsqrt.pop %v1471
    %v1473 = vmul.f32 %v1472, %v1380
    %1475 = vset.pattern.permute.xlu0 1
    %1476 = vperm.xlu0 %1475, %v1473
    %v1477 = vpop.permute.xlu0 %1476
    %v1479 = vmul.f32 %v1470, %v1477
    %1480 = vset.pattern.permute.xlu0 2
    %1481 = vperm.xlu0 %1480, %v1380
    %v1482 = vpop.permute.xlu0 %1481
    %v1484 = vadd.f32 %v1479, %v1482
    %vm1485 = vcmp.ge.f32.partialorder %v1484, 0.0
    %v1486 = vmul.f32 %v1484, 0.2
    %v1487 = vsel %vm1485, %v1484, %v1486
    %1488 = vrot.lane.b32.xlu0 %v1487, 9
    %v1489 = vpop.permute.xlu0 %1488
    %v1490 = vmul.f32 %v1489, %v1338
    %1491 = vrot.lane.b32.xlu0 %v1487, 8
    %v1492 = vpop.permute.xlu0 %1491
    %v1493 = vmul.f32 %v1492, %v1343
    %1494 = vrot.lane.b32.xlu0 %v1487, 7
    %v1495 = vpop.permute.xlu0 %1494
    %v1496 = vmul.f32 %v1495, %v1350
    %1497 = vrot.lane.b32.xlu0 %v1487, 1
    %v1498 = vpop.permute.xlu0 %1497
    %v1499 = vmul.f32 %v1498, %v1355
    %1500 = vrot.lane.b32.xlu0 %v1487, 127
    %v1501 = vpop.permute.xlu0 %1500
    %v1502 = vmul.f32 %v1501, %v1360
    %1503 = vrot.lane.b32.xlu0 %v1487, 121
    %v1504 = vpop.permute.xlu0 %1503
    %v1505 = vmul.f32 %v1504, %v1367
    %1506 = vrot.lane.b32.xlu0 %v1487, 120
    %v1507 = vpop.permute.xlu0 %1506
    %v1508 = vmul.f32 %v1507, %v1372
    %1509 = vrot.lane.b32.xlu0 %v1487, 119
    %v1510 = vpop.permute.xlu0 %1509
    %v1511 = vmul.f32 %v1510, %v1378
    %v1512 = vld [vmem:[%s1 + $0x48] sm:$0xff]
    %v1513 = vld [vmem:[%s1 + $0x40] sm:$0xff]
    %1515 = vset.pattern.permute.xlu0 0
    %1516 = vperm.xlu0 %1515, %v1512
    %v1517 = vpop.permute.xlu0 %1516
    %v1520 = vsel %vm526, %v1513, 0
    %1522 = vmatprep.subr.mxu0 0.0
    %1523 = vmatpush1.msra.mxu0 0.0
    %1524 = vmatprep.subr.mxu0 0.0
    %1525 = vmatpush1.msra.mxu0 0.0
    %1526 = vmatprep.subr.mxu0 0.0
    %1527 = vmatpush1.msra.mxu0 0.0
    %1528 = vmatprep.subr.mxu0 0.0
    %1529 = vmatpush1.msra.mxu0 0.0
    %1530 = vmatprep.subr.mxu0 0.0
    %1531 = vmatpush1.msra.mxu0 0.0
    %1532 = vmatprep.subr.mxu0 0.0
    %1533 = vmatpush1.msra.mxu0 0.0
    %1534 = vmatprep.subr.mxu0 0.0
    %1535 = vmatpush1.msra.mxu0 0.0
    %1536 = vmatprep.subr.mxu0 0.0
    %1537 = vmatpush1.msra.mxu0 %v1511
    %1538 = vmatprep.subr.mxu0 0.0
    %1539 = vmatpush1.msra.mxu0 %v1508
    %1540 = vmatprep.subr.mxu0 0.0
    %1541 = vmatpush1.msra.mxu0 %v1505
    %1542 = vmatprep.subr.mxu0 0.0
    %1543 = vmatpush1.msra.mxu0 %v1502
    %1544 = vmatprep.subr.mxu0 0.0
    %1545 = vmatpush1.msra.mxu0 %v1487
    %1546 = vmatprep.subr.mxu0 0.0
    %1547 = vmatpush1.msra.mxu0 %v1499
    %1548 = vmatprep.subr.mxu0 0.0
    %1549 = vmatpush1.msra.mxu0 %v1496
    %1550 = vmatprep.subr.mxu0 0.0
    %1551 = vmatpush1.msra.mxu0 %v1493
    %1552 = vmatprep.subr.mxu0 0.0
    %1553 = vmatpush1.msra.mxu0 %v1490
    %1554 = vmatprep.subr.mxu0 0.0
    %1555 = vmatpush2.msra.mxu0 0.0
    %1556 = vmatprep.subr.mxu0 0.0
    %1557 = vmatpush2.msra.mxu0 0.0
    %1558 = vmatprep.subr.mxu0 0.0
    %1559 = vmatpush2.msra.mxu0 0.0
    %1560 = vmatprep.subr.mxu0 0.0
    %1561 = vmatpush2.msra.mxu0 0.0
    %1562 = vmatprep.subr.mxu0 0.0
    %1563 = vmatpush2.msra.mxu0 0.0
    %1564 = vmatprep.subr.mxu0 0.0
    %1565 = vmatpush2.msra.mxu0 0.0
    %1566 = vmatprep.subr.mxu0 0.0
    %1567 = vmatpush2.msra.mxu0 0.0
    %1568 = vmatprep.subr.mxu0 0.0
    %1569 = vmatpush2.msra.mxu0 0.0
    %1570 = vmatprep.subr.mxu0 0.0
    %1571 = vmatpush2.msra.mxu0 0.0
    %1572 = vmatprep.subr.mxu0 0.0
    %1573 = vmatpush2.msra.mxu0 0.0
    %1574 = vmatprep.subr.mxu0 0.0
    %1575 = vmatpush2.msra.mxu0 0.0
    %1576 = vmatprep.subr.mxu0 0.0
    %1577 = vmatpush2.msra.mxu0 0.0
    %1578 = vmatprep.subr.mxu0 0.0
    %1579 = vmatpush2.msra.mxu0 0.0
    %1580 = vmatprep.subr.mxu0 0.0
    %1581 = vmatpush2.msra.mxu0 0.0
    %1582 = vmatprep.subr.mxu0 0.0
    %1583 = vmatpush2.msra.mxu0 0.0
    %1584 = vmatprep.subr.mxu0 0.0
    %1585 = vmatpush2.msra.mxu0 0.0
    %1586 = vmatprep.mubr.f32.mxu0 0.0
    %1587 = vmatmul.mubr.f32.gmra.mxu0 %v1520
    %v1588 = vpop.f32.mrf.mxu0
    %v1589 = vadd.f32 %v1517, %v1588
    %v1590 = vpop.f32.mrf.mxu0
    %1591 = vdwg.mxu0
    %1592 = vadd.xlane.f32.xlu0 %v1589
    %v1593 = vpop.xlane.xlu0 %1592
    %v1594 = vmul.f32 %v1589, %v1589
    %1595 = vadd.xlane.f32.xlu0 %v1594
    %v1596 = vpop.xlane.xlu0 %1595
    %v1597 = vmul.f32 %v1593, 0.0078125
    %v1598 = vmul.f32 %v1596, 0.0078125
    %v1599 = vmul.f32 %v1597, %v1597
    %v1600 = vsub.f32 %v1598, %v1599
    %v1601 = vmax.f32 %v1600, 0.0
    %v1602 = vsub.f32 %v1589, %v1597
    %v1603 = vadd.f32 %v1601, 1e-05
    %v1604 = vrsqrt.pop %v1603
    %v1605 = vmul.f32 %v1604, %v1512
    %1607 = vset.pattern.permute.xlu0 1
    %1608 = vperm.xlu0 %1607, %v1605
    %v1609 = vpop.permute.xlu0 %1608
    %v1611 = vmul.f32 %v1602, %v1609
    %1612 = vset.pattern.permute.xlu0 2
    %1613 = vperm.xlu0 %1612, %v1512
    %v1614 = vpop.permute.xlu0 %1613
    %v1616 = vadd.f32 %v1611, %v1614
    %vm1617 = vcmp.ge.f32.partialorder %v1616, 0.0
    %v1618 = vmul.f32 %v1616, 0.2
    %v1619 = vsel %vm1617, %v1616, %v1618
    %v1620 = vld [vmem:[%s1 + $0x50] sm:$0xff]
    %v1621 = vlaneseq
    %v1622 = vshrl.u32 %v1621, 7
    %v1623 = vsub.s32 0, %v1622
    %v1624 = vrot.slane %v1619, %v1623
    %v1625 = vmul.f32 %v1620, %v1624
    %v1626 = vld [vmem:[%s1 + $0x58] sm:$0xff]
    %v1627 = vlaneseq
    %v1628 = vshrl.u32 %v1627, 7
    %v1629 = vsub.s32 1, %v1628
    %v1630 = vrot.slane %v1619, %v1629
    %v1631 = vmul.f32 %v1626, %v1630
    %v1632 = vadd.f32 %v1625, %v1631
    %v1633 = vld [vmem:[%s1 + $0x60] sm:$0xff]
    %v1634 = vlaneseq
    %v1635 = vshrl.u32 %v1634, 7
    %v1636 = vsub.s32 2, %v1635
    %v1637 = vrot.slane %v1619, %v1636
    %v1638 = vmul.f32 %v1633, %v1637
    %v1639 = vadd.f32 %v1632, %v1638
    %v1640 = vld [vmem:[%s1 + $0x68] sm:$0xff]
    %v1641 = vlaneseq
    %v1642 = vshrl.u32 %v1641, 7
    %v1643 = vsub.s32 3, %v1642
    %v1644 = vrot.slane %v1619, %v1643
    %v1645 = vmul.f32 %v1640, %v1644
    %v1646 = vadd.f32 %v1639, %v1645
    %v1647 = vld [vmem:[%s1 + $0x70] sm:$0xff]
    %v1648 = vlaneseq
    %v1649 = vshrl.u32 %v1648, 7
    %v1650 = vsub.s32 4, %v1649
    %v1651 = vrot.slane %v1619, %v1650
    %v1652 = vmul.f32 %v1647, %v1651
    %v1653 = vadd.f32 %v1646, %v1652
    %v1654 = vld [vmem:[%s1 + $0x78] sm:$0xff]
    %v1655 = vlaneseq
    %v1656 = vshrl.u32 %v1655, 7
    %v1657 = vsub.s32 5, %v1656
    %v1658 = vrot.slane %v1619, %v1657
    %v1659 = vmul.f32 %v1654, %v1658
    %v1660 = vadd.f32 %v1653, %v1659
    %v1661 = vld [vmem:[%s1 + $0x80] sm:$0xff]
    %v1662 = vlaneseq
    %v1663 = vshrl.u32 %v1662, 7
    %v1664 = vsub.s32 6, %v1663
    %v1665 = vrot.slane %v1619, %v1664
    %v1666 = vmul.f32 %v1661, %v1665
    %v1667 = vadd.f32 %v1660, %v1666
    %v1668 = vld [vmem:[%s1 + $0x88] sm:$0xff]
    %v1669 = vlaneseq
    %v1670 = vshrl.u32 %v1669, 7
    %v1671 = vsub.s32 7, %v1670
    %v1672 = vrot.slane %v1619, %v1671
    %v1673 = vmul.f32 %v1668, %v1672
    %v1674 = vadd.f32 %v1667, %v1673
    %vm1675 = vcmask 523264
    %v1676 = vsel %vm1675, %v1674, 0.0
    %1677 = vadd.xlane.f32.xlu0 %v1676
    %v1678 = vpop.xlane.xlu0 %1677
    %1680 = vrot.lane.b32.xlu0 %v1624, 64
    %v1681 = vpop.permute.xlu0 %1680
    %v1683 = vmul.f32 %v1620, %v1681
    %1685 = vrot.lane.b32.xlu0 %v1630, 64
    %v1686 = vpop.permute.xlu0 %1685
    %v1688 = vmul.f32 %v1626, %v1686
    %v1689 = vadd.f32 %v1683, %v1688
    %1691 = vrot.lane.b32.xlu0 %v1637, 64
    %v1692 = vpop.permute.xlu0 %1691
    %v1694 = vmul.f32 %v1633, %v1692
    %v1695 = vadd.f32 %v1689, %v1694
    %1697 = vrot.lane.b32.xlu0 %v1644, 64
    %v1698 = vpop.permute.xlu0 %1697
    %v1700 = vmul.f32 %v1640, %v1698
    %v1701 = vadd.f32 %v1695, %v1700
    %1703 = vrot.lane.b32.xlu0 %v1651, 64
    %v1704 = vpop.permute.xlu0 %1703
    %v1706 = vmul.f32 %v1647, %v1704
    %v1707 = vadd.f32 %v1701, %v1706
    %1709 = vrot.lane.b32.xlu0 %v1658, 64
    %v1710 = vpop.permute.xlu0 %1709
    %v1712 = vmul.f32 %v1654, %v1710
    %v1713 = vadd.f32 %v1707, %v1712
    %1715 = vrot.lane.b32.xlu0 %v1665, 64
    %v1716 = vpop.permute.xlu0 %1715
    %v1718 = vmul.f32 %v1661, %v1716
    %v1719 = vadd.f32 %v1713, %v1718
    %1721 = vrot.lane.b32.xlu0 %v1672, 64
    %v1722 = vpop.permute.xlu0 %1721
    %v1724 = vmul.f32 %v1668, %v1722
    %v1725 = vadd.f32 %v1719, %v1724
    %v1726 = vsel %vm1675, %v1725, 0.0
    %1727 = vadd.xlane.f32.xlu0 %v1726
    %v1728 = vpop.xlane.xlu0 %1727
    %vm1729 = vcmask 7168
    %v1730 = vsel %vm1729, %v1678, %v1728
    %v1731 = vld [vmem:[%s1 + $0x90] sm:$0xff]
    %1733 = vset.pattern.permute.xlu0 0
    %1734 = vperm.xlu0 %1733, %v1731
    %v1735 = vpop.permute.xlu0 %1734
    %v1737 = vadd.f32 %v1730, %v1735
    %vm1738 = vcmp.ge.f32.partialorder %v1737, 0.0
    %v1739 = vmul.f32 %v1737, 0.2
    %v1740 = vsel %vm1738, %v1737, %v1739
    %v1741 = vld [vmem:[%s1 + $0x98] sm:$0xff]
    %1743 = vset.pattern.permute.xlu0 0
    %1744 = vperm.xlu0 %1743, %v1741
    %v1745 = vpop.permute.xlu0 %1744
    %v1747 = vmul.f32 %v1745, %v1740
    %vm1748 = vcmask 15360
    %v1749 = vsel %vm1748, %v1747, 0.0
    %v1750 = vrot.slane %v1749, 4
    %v1751 = vadd.f32 %v1749, %v1750
    %v1752 = vrot.slane %v1751, 2
    %v1753 = vadd.f32 %v1751, %v1752
    %v1754 = vrot.slane %v1753, 1
    %v1755 = vadd.f32 %v1753, %v1754
    %v1756 = vld [vmem:[%s1 + $0xa0] sm:$0x1]
    %1758 = vset.pattern.permute.xlu0 0
    %1759 = vperm.xlu0 %1758, %v1756
    %v1760 = vpop.permute.xlu0 %1759
    %v1762 = vadd.f32 %v1755, %v1760
    %vm1763 = vcmask 8192
    %1764 = vst.msk [vmem:[#allocation2] sm:$0x1] %vm1763, %v1762
    // Predicated region
    $region18: #{_lambda_.1} parent=1 // pred_check
      _
    $region19: #{_lambda_.1} parent=1 // pred_check_branch
      %1766 = sbr.rel (0) target = $region21
    $region20: #{_lambda_.1} parent=1 // pred_region
      %s1768 = ssub.s32 16, 16
      %1769 = vsyncadd [#allocation3], %s1768
      %s1771 = sshll.u32 [#allocation2], 4
      %s1772 = int_to_ptr.vmem [resolvable:$true] %s1771
      %1774 = dma.vmem_to_hbm [thread:$0]  %s1772, 16, %s4, [#allocation3]
    $region21: #{_lambda_.1} parent=1 // pred_fallthru
      _
    // Predicated region
    $region22: #{_lambda_.1} parent=1 // pred_check
      _
    $region23: #{_lambda_.1} parent=1 // pred_check_branch
      %1776 = sbr.rel (0) target = $region25
    $region24: #{_lambda_.1} parent=1 // pred_region
      %1777 = dma.done [#allocation3], 16
    $region25: #{_lambda_.1} parent=1 // pred_fallthru
      _
    %1778 = vsyncpa [#allocation3], 1

</llo_original>
